<compile_context>
chip_gen: v7x
topology: tpu7x:2x2x1
jax: 0.10.0
libtpu: 0.0.40
codegen_flags: <defaults>
</compile_context>

<pallas_src>
import math
from functools import partial

import jax
import jax.numpy as jnp
from jax.experimental import pallas as pl
from jax.experimental.pallas import tpu as pltpu


def acnn_energy_kernel(
    an_ref,      # (M, Vb, 1) f32  atomic number of the m-th neighbour (edge source) of each node
    dist_ref,    # (M, Vb, 1) f32  distance of the m-th incoming edge of each node
    types_ref,   # (1, T*K)   f32  atom types, each repeated K times   (col t*K+k = type_t)
    cut_ref,     # (1, T*K)   f32  interaction cutoffs, tiled T times  (col t*K+k = cut_k)
    mean_ref,    # (1, T*K)   f32  rbf kernel means, tiled T times
    scale_ref,   # (1, T*K)   f32  rbf kernel scalings, tiled T times
    w1_ref, b1_ref,   # (T*K, H1), (1, H1)
    w2_ref, b2_ref,   # (H1, H2),  (1, H2)
    w3_ref, b3_ref,   # (H2, O),   (1, O)
    out_ref,     # (G, O)     per-graph energies of the G graphs in this grid step
    *, graphs_per_step, nodes_per_graph,
):
    f32 = jnp.float32
    G, N = graphs_per_step, nodes_per_graph
    M = dist_ref.shape[0]

    types = types_ref[...]
    cut = cut_ref[...]
    mean = mean_ref[...]
    scale = scale_ref[...]

    # Edge -> node scatter as a sum over the M fixed neighbour slots (no one-hot matmul).
    # The type x radial-filter outer product is built directly in the (T*K)-wide layout,
    # so each slot is a single elementwise pass over a (G*N, T*K) tile.
    hv = None
    for m in range(M):
        d = dist_ref[m]                                        # (Vb, 1)
        a = an_ref[m]                                          # (Vb, 1)
        rbf = jnp.exp(-scale * (d - mean) ** 2)                # (Vb, T*K)
        cosv = 0.5 * (jnp.cos(jnp.pi * d / cut) + 1.0)
        he = rbf * jnp.where(d <= cut, cosv, 0.0)              # radial pooling
        feat = (a == types).astype(f32)                        # source-type one-hot
        msg = feat * he                                        # (Vb, T*K)
        hv = msg if hv is None else hv + msg

    # Predictor MLP on node features (Dropout is identity at inference).
    h = jnp.maximum(jnp.dot(hv, w1_ref[...], preferred_element_type=f32)
                    + b1_ref[...], 0.0)                        # (Vb, H1)
    h = jnp.maximum(jnp.dot(h, w2_ref[...], preferred_element_type=f32)
                    + b2_ref[...], 0.0)                        # (Vb, H2)
    y = jnp.dot(h, w3_ref[...], preferred_element_type=f32) + b3_ref[...]   # (Vb, O)

    # Per-graph energy = sum over each graph's N node rows -> one (G, O) store per step.
    out_ref[...] = jnp.concatenate(
        [jnp.sum(y[g * N:(g + 1) * N, :], axis=0, keepdims=True) for g in range(G)],
        axis=0)


def acnn_energy_forward(params, an_src_m, dist_m, *, nodes_per_graph, graphs_per_step):
    """an_src_m : (M, V, 1) f32  atomic number of the m-th neighbour (edge source) of node v
       dist_m   : (M, V, 1) f32  distance of the m-th incoming edge of node v
    Nodes are graph-major (node v = b*nodes_per_graph + i); every node has exactly M
    incoming edges (fixed-k neighbour lists, as ACNN constructs its graphs)."""
    M, V, _ = dist_m.shape
    N = nodes_per_graph
    G = graphs_per_step
    B = V // N
    assert V == B * N and B % G == 0

    T = params["features_to_use"].shape[1]
    K = params["cutoffs"].shape[1]
    TK = T * K
    H1 = params["w1"].shape[1]
    H2 = params["w2"].shape[1]
    O = params["w3"].shape[1]
    Vb = G * N

    # Expand the radial / type parameters to the (T*K)-wide message layout once, so the
    # kernel's outer product is a plain elementwise multiply (column index = t*K + k).
    types_exp = jnp.repeat(params["features_to_use"], K, axis=1)   # (1, T*K)
    cut_exp = jnp.tile(params["cutoffs"], (1, T))                  # (1, T*K)
    mean_exp = jnp.tile(params["means"], (1, T))                   # (1, T*K)
    scale_exp = jnp.tile(params["scalings"], (1, T))               # (1, T*K)

    def full(shape):
        return pl.BlockSpec(shape, lambda g, _nd=len(shape): (0,) * _nd)

    edge_spec = pl.BlockSpec((M, Vb, 1), lambda g: (0, g, 0))

    # NOTE: the weight specs are grid-invariant; on VMEM-tight configs (v7x with large
    # G*N blocks) add pipeline_mode=pl.Buffered(1) to single-buffer them.
    in_specs = [
        edge_spec, edge_spec,                                      # an_src_m, dist_m
        full((1, TK)), full((1, TK)), full((1, TK)), full((1, TK)),
        full((TK, H1)), full((1, H1)),                             # w1, b1
        full((H1, H2)), full((1, H2)),                             # w2, b2
        full((H2, O)), full((1, O)),                               # w3, b3
    ]

    inputs = (
        an_src_m, dist_m,
        types_exp, cut_exp, mean_exp, scale_exp,
        params["w1"], params["b1"],
        params["w2"], params["b2"],
        params["w3"], params["b3"],
    )

    flops = int(2 * V * (TK * H1 + H1 * H2 + H2 * O)     # MLP matmuls
                + 8 * V * M * TK)                        # radial pooling / message build
    transcendentals = int(2 * V * M * TK)                # exp + cos per edge x filter col
    bytes_accessed = int(sum(int(x.size) * x.dtype.itemsize for x in inputs)
                         + B * O * 4)

    out = pl.pallas_call(
        partial(acnn_energy_kernel, graphs_per_step=G, nodes_per_graph=N),
        out_shape=jax.ShapeDtypeStruct((B // G, G, O), jnp.float32),
        grid=(B // G,),
        in_specs=in_specs,
        out_specs=pl.BlockSpec((None, G, O), lambda g: (g, 0, 0)),
        compiler_params=pltpu.CompilerParams(
            dimension_semantics=("parallel",),
            vmem_limit_bytes=32 * 1024 * 1024,
        ),
        cost_estimate=pl.CostEstimate(
            flops=flops, transcendentals=transcendentals,
            bytes_accessed=bytes_accessed),
    )(*inputs)
    return out.reshape(B, O)


# ----------------------------- parameter setup -----------------------------

def truncated_normal(key, shape, std):
    # matches the torch helper semantics: N(0, std) truncated to |x| < 2*std
    return std * jax.random.truncated_normal(key, -2.0, 2.0, shape, jnp.float32)


def init_params(key, features_to_use, hidden_sizes, weight_init_stddevs,
                num_tasks, radial=None):
    if radial is None:
        radial = [[12.0], [0.0, 2.0, 4.0, 6.0, 8.0], [4.0]]
    combos = [(c, m, s) for c in radial[0] for m in radial[1] for s in radial[2]]
    K = len(combos)
    cutoffs = jnp.array([[c for (c, m, s) in combos]], dtype=jnp.float32)   # (1, K)
    means = jnp.array([[m for (c, m, s) in combos]], dtype=jnp.float32)     # (1, K)
    scalings = jnp.array([[s for (c, m, s) in combos]], dtype=jnp.float32)  # (1, K)

    T = len(features_to_use)
    in_size = K * T
    sizes = [in_size] + list(hidden_sizes) + [num_tasks]

    params = {
        "cutoffs": cutoffs,
        "means": means,
        "scalings": scalings,
        "features_to_use": jnp.array([features_to_use], dtype=jnp.float32),  # (1, T)
        "K": K, "T": T,
    }
    keys = jax.random.split(key, 2 * (len(sizes) - 1))
    for i in range(len(sizes) - 1):
        fan_in, fan_out = sizes[i], sizes[i + 1]
        # torch Linear weight is (out, in); we store the transpose (in, out).
        w = truncated_normal(keys[2 * i], (fan_out, fan_in),
                             weight_init_stddevs[i]).T
        bound = 1.0 / math.sqrt(fan_in)  # torch default bias init (not re-initialized)
        b = jax.random.uniform(keys[2 * i + 1], (1, fan_out),
                               jnp.float32, -bound, bound)
        params[f"w{i + 1}"] = w
        params[f"b{i + 1}"] = b
    return params


# ----------------------------- pure-JAX reference -----------------------------

def reference_forward(params, atomic_number, distances, src_idx, dst_idx, batch_size):
    feat = (atomic_number == params["features_to_use"]).astype(jnp.float32)     # (V, T)
    d = distances
    rbf = jnp.exp(-params["scalings"] * (d - params["means"]) ** 2)
    cosv = 0.5 * (jnp.cos(jnp.pi * d / params["cutoffs"]) + 1.0)
    he = rbf * jnp.where(d <= params["cutoffs"], cosv, 0.0)                     # (E, K)
    fsrc = feat[src_idx]                                                        # (E, T)
    msg = (fsrc[:, :, None] * he[:, None, :]).reshape(d.shape[0], -1)           # (E, T*K)
    V = atomic_number.shape[0]
    hv = jnp.zeros((V, msg.shape[1]), jnp.float32).at[dst_idx].add(msg)         # (V, T*K)
    h = jnp.maximum(hv @ params["w1"] + params["b1"], 0.0)
    h = jnp.maximum(h @ params["w2"] + params["b2"], 0.0)
    y = h @ params["w3"] + params["b3"]                                         # (V, O)
    return y.reshape(batch_size, -1, y.shape[1]).sum(axis=1)                    # (B, O)


# ----------------------------- demo -----------------------------

if __name__ == "__main__":
    key = jax.random.PRNGKey(0)

    # small synthetic problem
    B = 4                # graphs (batch); B // G grid steps kept even for v7x's 2 TCs
    N = 8                # nodes per graph (equal, as the predictor's reshape assumes)
    V = B * N            # total nodes
    M = 4                # fixed neighbours per node (k-NN graph)
    E = V * M            # total (directed) edges, grouped by destination node
    G = 2                # graphs processed per grid step
    features_to_use = [1.0, 6.0, 7.0, 8.0]   # T = 4 atom types
    hidden_sizes = [32, 32]
    weight_init_stddevs = [0.125, 0.125, 0.01]
    num_tasks = 1

    k_par, k_an, k_d = jax.random.split(key, 3)
    params = init_params(k_par, features_to_use, hidden_sizes,
                         weight_init_stddevs, num_tasks)

    # node atomic numbers drawn from the allowed types
    type_choice = jax.random.randint(k_an, (V,), 0, len(features_to_use))
    atomic_number = jnp.array(features_to_use, jnp.float32)[type_choice][:, None]  # (V, 1)

    # k-NN style graph per molecule: node i receives from (i+1..i+M) mod N (same graph).
    # Edges are grouped by destination node (M consecutive edges per node), as in
    # ACNN's fixed-neighbour DGL graphs.
    src_list, dst_list = [], []
    for b in range(B):
        for i in range(N):
            for m in range(1, M + 1):
                src_list.append(b * N + (i + m) % N)
                dst_list.append(b * N + i)
    src_idx = jnp.array(src_list, dtype=jnp.int32)
    dst_idx = jnp.array(dst_list, dtype=jnp.int32)

    distances = jax.random.uniform(k_d, (E, 1), jnp.float32, 1.0, 13.0)  # some > cutoff 12

    # Wrapper-side prep: per-edge source-node gather and the fixed-degree (M, V, 1)
    # neighbour-slot layout that replaces the dense one-hot scatter matmul.
    an_src = atomic_number[src_idx, 0]                      # (E,)
    an_src_m = an_src.reshape(V, M).T[:, :, None]           # (M, V, 1)
    dist_m = distances[:, 0].reshape(V, M).T[:, :, None]    # (M, V, 1)

    out = acnn_energy_forward(params, an_src_m, dist_m,
                              nodes_per_graph=N, graphs_per_step=G)
    out = jax.block_until_ready(out)

    ref = reference_forward(params, atomic_number, distances, src_idx, dst_idx, B)
    assert out.shape == (B, num_tasks)
    assert jnp.allclose(out, ref, rtol=1e-3, atol=1e-3), (out, ref)

    print("KERNEL_OK")
</pallas_src>

<mosaic_0001>
module attributes {stable_mosaic.version = 11 : i64} {
  func.func @acnn_energy_kernel(%arg0: i32, %arg1: memref<4x16x1xf32, #tpu.memory_space<vmem>>, %arg2: memref<4x16x1xf32, #tpu.memory_space<vmem>>, %arg3: memref<1x20xf32, #tpu.memory_space<vmem>>, %arg4: memref<1x20xf32, #tpu.memory_space<vmem>>, %arg5: memref<1x20xf32, #tpu.memory_space<vmem>>, %arg6: memref<1x20xf32, #tpu.memory_space<vmem>>, %arg7: memref<20x32xf32, #tpu.memory_space<vmem>>, %arg8: memref<1x32xf32, #tpu.memory_space<vmem>>, %arg9: memref<32x32xf32, #tpu.memory_space<vmem>>, %arg10: memref<1x32xf32, #tpu.memory_space<vmem>>, %arg11: memref<32x1xf32, #tpu.memory_space<vmem>>, %arg12: memref<1x1xf32, #tpu.memory_space<vmem>>, %arg13: memref<1x2x1xf32, #tpu.memory_space<vmem>>) attributes {dimension_semantics = [#tpu.dimension_semantics<parallel>], iteration_bounds = array<i64: 2>, scalar_prefetch = 0 : i64, scratch_operands = 0 : i64, tpu.core_type = #tpu.core_type<tc>, window_params = [{transform_indices = @transform_0, window_bounds = array<i64: 4, 16, 1>}, {transform_indices = @transform_1, window_bounds = array<i64: 4, 16, 1>}, {pipeline_mode = #tpu.pipeline_mode<synchronous>, transform_indices = @transform_2, window_bounds = array<i64: 1, 20>}, {pipeline_mode = #tpu.pipeline_mode<synchronous>, transform_indices = @transform_3, window_bounds = array<i64: 1, 20>}, {pipeline_mode = #tpu.pipeline_mode<synchronous>, transform_indices = @transform_4, window_bounds = array<i64: 1, 20>}, {pipeline_mode = #tpu.pipeline_mode<synchronous>, transform_indices = @transform_5, window_bounds = array<i64: 1, 20>}, {pipeline_mode = #tpu.pipeline_mode<synchronous>, transform_indices = @transform_6, window_bounds = array<i64: 20, 32>}, {pipeline_mode = #tpu.pipeline_mode<synchronous>, transform_indices = @transform_7, window_bounds = array<i64: 1, 32>}, {pipeline_mode = #tpu.pipeline_mode<synchronous>, transform_indices = @transform_8, window_bounds = array<i64: 32, 32>}, {pipeline_mode = #tpu.pipeline_mode<synchronous>, transform_indices = @transform_9, window_bounds = array<i64: 1, 32>}, {pipeline_mode = #tpu.pipeline_mode<synchronous>, transform_indices = @transform_10, window_bounds = array<i64: 32, 1>}, {pipeline_mode = #tpu.pipeline_mode<synchronous>, transform_indices = @transform_11, window_bounds = array<i64: 1, 1>}, {transform_indices = @transform_12, window_bounds = array<i64: 1, 2, 1>}]} {
    %c0 = arith.constant 0 : index
    %c0_0 = arith.constant 0 : index
    %0 = vector.load %arg3[%c0, %c0_0] : memref<1x20xf32, #tpu.memory_space<vmem>>, vector<1x20xf32>
    %c0_1 = arith.constant 0 : index
    %c0_2 = arith.constant 0 : index
    %1 = vector.load %arg4[%c0_1, %c0_2] : memref<1x20xf32, #tpu.memory_space<vmem>>, vector<1x20xf32>
    %c0_3 = arith.constant 0 : index
    %c0_4 = arith.constant 0 : index
    %2 = vector.load %arg5[%c0_3, %c0_4] : memref<1x20xf32, #tpu.memory_space<vmem>>, vector<1x20xf32>
    %c0_5 = arith.constant 0 : index
    %c0_6 = arith.constant 0 : index
    %3 = vector.load %arg6[%c0_5, %c0_6] : memref<1x20xf32, #tpu.memory_space<vmem>>, vector<1x20xf32>
    %c0_7 = arith.constant 0 : index
    %c0_8 = arith.constant 0 : index
    %c0_9 = arith.constant 0 : index
    %4 = vector.load %arg2[%c0_7, %c0_8, %c0_9] : memref<4x16x1xf32, #tpu.memory_space<vmem>>, vector<1x16x1xf32>
    %5 = vector.shape_cast %4 : vector<1x16x1xf32> to vector<16x1xf32>
    %c0_10 = arith.constant 0 : index
    %c0_11 = arith.constant 0 : index
    %c0_12 = arith.constant 0 : index
    %6 = vector.load %arg1[%c0_10, %c0_11, %c0_12] : memref<4x16x1xf32, #tpu.memory_space<vmem>>, vector<1x16x1xf32>
    %7 = vector.shape_cast %6 : vector<1x16x1xf32> to vector<16x1xf32>
    %cst = arith.constant 0.000000e+00 : f32
    %8 = vector.broadcast %cst : f32 to vector<1x20xf32>
    %9 = arith.subf %8, %3 : vector<1x20xf32>
    %10 = vector.broadcast %5 : vector<16x1xf32> to vector<16x20xf32>
    %11 = vector.broadcast %2 : vector<1x20xf32> to vector<16x20xf32>
    %12 = arith.subf %10, %11 : vector<16x20xf32>
    %13 = arith.mulf %12, %12 : vector<16x20xf32>
    %14 = vector.broadcast %9 : vector<1x20xf32> to vector<16x20xf32>
    %15 = arith.mulf %14, %13 : vector<16x20xf32>
    %16 = math.exp %15 : vector<16x20xf32>
    %cst_13 = arith.constant 3.14159274 : f32
    %17 = vector.broadcast %cst_13 : f32 to vector<16x1xf32>
    %18 = arith.mulf %17, %5 : vector<16x1xf32>
    %19 = vector.broadcast %18 : vector<16x1xf32> to vector<16x20xf32>
    %20 = vector.broadcast %1 : vector<1x20xf32> to vector<16x20xf32>
    %21 = arith.divf %19, %20 : vector<16x20xf32>
    %22 = math.cos %21 : vector<16x20xf32>
    %cst_14 = arith.constant 1.000000e+00 : f32
    %23 = vector.broadcast %cst_14 : f32 to vector<16x20xf32>
    %24 = arith.addf %22, %23 : vector<16x20xf32>
    %cst_15 = arith.constant 5.000000e-01 : f32
    %25 = vector.broadcast %cst_15 : f32 to vector<16x20xf32>
    %26 = arith.mulf %25, %24 : vector<16x20xf32>
    %27 = vector.broadcast %5 : vector<16x1xf32> to vector<16x20xf32>
    %28 = vector.broadcast %1 : vector<1x20xf32> to vector<16x20xf32>
    %29 = arith.cmpf ole, %27, %28 : vector<16x20xf32>
    %cst_16 = arith.constant 0.000000e+00 : f32
    %30 = vector.broadcast %cst_16 : f32 to vector<16x20xf32>
    %31 = arith.select %29, %26, %30 : vector<16x20xi1>, vector<16x20xf32>
    %32 = arith.mulf %16, %31 : vector<16x20xf32>
    %33 = vector.broadcast %7 : vector<16x1xf32> to vector<16x20xf32>
    %34 = vector.broadcast %0 : vector<1x20xf32> to vector<16x20xf32>
    %35 = arith.cmpf oeq, %33, %34 : vector<16x20xf32>
    %36 = arith.extui %35 : vector<16x20xi1> to vector<16x20xi32>
    %37 = arith.sitofp %36 : vector<16x20xi32> to vector<16x20xf32>
    %38 = arith.mulf %37, %32 : vector<16x20xf32>
    %c1 = arith.constant 1 : index
    %c0_17 = arith.constant 0 : index
    %c0_18 = arith.constant 0 : index
    %39 = vector.load %arg2[%c1, %c0_17, %c0_18] : memref<4x16x1xf32, #tpu.memory_space<vmem>>, vector<1x16x1xf32>
    %40 = vector.shape_cast %39 : vector<1x16x1xf32> to vector<16x1xf32>
    %c1_19 = arith.constant 1 : index
    %c0_20 = arith.constant 0 : index
    %c0_21 = arith.constant 0 : index
    %41 = vector.load %arg1[%c1_19, %c0_20, %c0_21] : memref<4x16x1xf32, #tpu.memory_space<vmem>>, vector<1x16x1xf32>
    %42 = vector.shape_cast %41 : vector<1x16x1xf32> to vector<16x1xf32>
    %cst_22 = arith.constant 0.000000e+00 : f32
    %43 = vector.broadcast %cst_22 : f32 to vector<1x20xf32>
    %44 = arith.subf %43, %3 : vector<1x20xf32>
    %45 = vector.broadcast %40 : vector<16x1xf32> to vector<16x20xf32>
    %46 = vector.broadcast %2 : vector<1x20xf32> to vector<16x20xf32>
    %47 = arith.subf %45, %46 : vector<16x20xf32>
    %48 = arith.mulf %47, %47 : vector<16x20xf32>
    %49 = vector.broadcast %44 : vector<1x20xf32> to vector<16x20xf32>
    %50 = arith.mulf %49, %48 : vector<16x20xf32>
    %51 = math.exp %50 : vector<16x20xf32>
    %cst_23 = arith.constant 3.14159274 : f32
    %52 = vector.broadcast %cst_23 : f32 to vector<16x1xf32>
    %53 = arith.mulf %52, %40 : vector<16x1xf32>
    %54 = vector.broadcast %53 : vector<16x1xf32> to vector<16x20xf32>
    %55 = vector.broadcast %1 : vector<1x20xf32> to vector<16x20xf32>
    %56 = arith.divf %54, %55 : vector<16x20xf32>
    %57 = math.cos %56 : vector<16x20xf32>
    %cst_24 = arith.constant 1.000000e+00 : f32
    %58 = vector.broadcast %cst_24 : f32 to vector<16x20xf32>
    %59 = arith.addf %57, %58 : vector<16x20xf32>
    %cst_25 = arith.constant 5.000000e-01 : f32
    %60 = vector.broadcast %cst_25 : f32 to vector<16x20xf32>
    %61 = arith.mulf %60, %59 : vector<16x20xf32>
    %62 = vector.broadcast %40 : vector<16x1xf32> to vector<16x20xf32>
    %63 = vector.broadcast %1 : vector<1x20xf32> to vector<16x20xf32>
    %64 = arith.cmpf ole, %62, %63 : vector<16x20xf32>
    %cst_26 = arith.constant 0.000000e+00 : f32
    %65 = vector.broadcast %cst_26 : f32 to vector<16x20xf32>
    %66 = arith.select %64, %61, %65 : vector<16x20xi1>, vector<16x20xf32>
    %67 = arith.mulf %51, %66 : vector<16x20xf32>
    %68 = vector.broadcast %42 : vector<16x1xf32> to vector<16x20xf32>
    %69 = vector.broadcast %0 : vector<1x20xf32> to vector<16x20xf32>
    %70 = arith.cmpf oeq, %68, %69 : vector<16x20xf32>
    %71 = arith.extui %70 : vector<16x20xi1> to vector<16x20xi32>
    %72 = arith.sitofp %71 : vector<16x20xi32> to vector<16x20xf32>
    %73 = arith.mulf %72, %67 : vector<16x20xf32>
    %74 = arith.addf %38, %73 : vector<16x20xf32>
    %c2 = arith.constant 2 : index
    %c0_27 = arith.constant 0 : index
    %c0_28 = arith.constant 0 : index
    %75 = vector.load %arg2[%c2, %c0_27, %c0_28] : memref<4x16x1xf32, #tpu.memory_space<vmem>>, vector<1x16x1xf32>
    %76 = vector.shape_cast %75 : vector<1x16x1xf32> to vector<16x1xf32>
    %c2_29 = arith.constant 2 : index
    %c0_30 = arith.constant 0 : index
    %c0_31 = arith.constant 0 : index
    %77 = vector.load %arg1[%c2_29, %c0_30, %c0_31] : memref<4x16x1xf32, #tpu.memory_space<vmem>>, vector<1x16x1xf32>
    %78 = vector.shape_cast %77 : vector<1x16x1xf32> to vector<16x1xf32>
    %cst_32 = arith.constant 0.000000e+00 : f32
    %79 = vector.broadcast %cst_32 : f32 to vector<1x20xf32>
    %80 = arith.subf %79, %3 : vector<1x20xf32>
    %81 = vector.broadcast %76 : vector<16x1xf32> to vector<16x20xf32>
    %82 = vector.broadcast %2 : vector<1x20xf32> to vector<16x20xf32>
    %83 = arith.subf %81, %82 : vector<16x20xf32>
    %84 = arith.mulf %83, %83 : vector<16x20xf32>
    %85 = vector.broadcast %80 : vector<1x20xf32> to vector<16x20xf32>
    %86 = arith.mulf %85, %84 : vector<16x20xf32>
    %87 = math.exp %86 : vector<16x20xf32>
    %cst_33 = arith.constant 3.14159274 : f32
    %88 = vector.broadcast %cst_33 : f32 to vector<16x1xf32>
    %89 = arith.mulf %88, %76 : vector<16x1xf32>
    %90 = vector.broadcast %89 : vector<16x1xf32> to vector<16x20xf32>
    %91 = vector.broadcast %1 : vector<1x20xf32> to vector<16x20xf32>
    %92 = arith.divf %90, %91 : vector<16x20xf32>
    %93 = math.cos %92 : vector<16x20xf32>
    %cst_34 = arith.constant 1.000000e+00 : f32
    %94 = vector.broadcast %cst_34 : f32 to vector<16x20xf32>
    %95 = arith.addf %93, %94 : vector<16x20xf32>
    %cst_35 = arith.constant 5.000000e-01 : f32
    %96 = vector.broadcast %cst_35 : f32 to vector<16x20xf32>
    %97 = arith.mulf %96, %95 : vector<16x20xf32>
    %98 = vector.broadcast %76 : vector<16x1xf32> to vector<16x20xf32>
    %99 = vector.broadcast %1 : vector<1x20xf32> to vector<16x20xf32>
    %100 = arith.cmpf ole, %98, %99 : vector<16x20xf32>
    %cst_36 = arith.constant 0.000000e+00 : f32
    %101 = vector.broadcast %cst_36 : f32 to vector<16x20xf32>
    %102 = arith.select %100, %97, %101 : vector<16x20xi1>, vector<16x20xf32>
    %103 = arith.mulf %87, %102 : vector<16x20xf32>
    %104 = vector.broadcast %78 : vector<16x1xf32> to vector<16x20xf32>
    %105 = vector.broadcast %0 : vector<1x20xf32> to vector<16x20xf32>
    %106 = arith.cmpf oeq, %104, %105 : vector<16x20xf32>
    %107 = arith.extui %106 : vector<16x20xi1> to vector<16x20xi32>
    %108 = arith.sitofp %107 : vector<16x20xi32> to vector<16x20xf32>
    %109 = arith.mulf %108, %103 : vector<16x20xf32>
    %110 = arith.addf %74, %109 : vector<16x20xf32>
    %c3 = arith.constant 3 : index
    %c0_37 = arith.constant 0 : index
    %c0_38 = arith.constant 0 : index
    %111 = vector.load %arg2[%c3, %c0_37, %c0_38] : memref<4x16x1xf32, #tpu.memory_space<vmem>>, vector<1x16x1xf32>
    %112 = vector.shape_cast %111 : vector<1x16x1xf32> to vector<16x1xf32>
    %c3_39 = arith.constant 3 : index
    %c0_40 = arith.constant 0 : index
    %c0_41 = arith.constant 0 : index
    %113 = vector.load %arg1[%c3_39, %c0_40, %c0_41] : memref<4x16x1xf32, #tpu.memory_space<vmem>>, vector<1x16x1xf32>
    %114 = vector.shape_cast %113 : vector<1x16x1xf32> to vector<16x1xf32>
    %cst_42 = arith.constant 0.000000e+00 : f32
    %115 = vector.broadcast %cst_42 : f32 to vector<1x20xf32>
    %116 = arith.subf %115, %3 : vector<1x20xf32>
    %117 = vector.broadcast %112 : vector<16x1xf32> to vector<16x20xf32>
    %118 = vector.broadcast %2 : vector<1x20xf32> to vector<16x20xf32>
    %119 = arith.subf %117, %118 : vector<16x20xf32>
    %120 = arith.mulf %119, %119 : vector<16x20xf32>
    %121 = vector.broadcast %116 : vector<1x20xf32> to vector<16x20xf32>
    %122 = arith.mulf %121, %120 : vector<16x20xf32>
    %123 = math.exp %122 : vector<16x20xf32>
    %cst_43 = arith.constant 3.14159274 : f32
    %124 = vector.broadcast %cst_43 : f32 to vector<16x1xf32>
    %125 = arith.mulf %124, %112 : vector<16x1xf32>
    %126 = vector.broadcast %125 : vector<16x1xf32> to vector<16x20xf32>
    %127 = vector.broadcast %1 : vector<1x20xf32> to vector<16x20xf32>
    %128 = arith.divf %126, %127 : vector<16x20xf32>
    %129 = math.cos %128 : vector<16x20xf32>
    %cst_44 = arith.constant 1.000000e+00 : f32
    %130 = vector.broadcast %cst_44 : f32 to vector<16x20xf32>
    %131 = arith.addf %129, %130 : vector<16x20xf32>
    %cst_45 = arith.constant 5.000000e-01 : f32
    %132 = vector.broadcast %cst_45 : f32 to vector<16x20xf32>
    %133 = arith.mulf %132, %131 : vector<16x20xf32>
    %134 = vector.broadcast %112 : vector<16x1xf32> to vector<16x20xf32>
    %135 = vector.broadcast %1 : vector<1x20xf32> to vector<16x20xf32>
    %136 = arith.cmpf ole, %134, %135 : vector<16x20xf32>
    %cst_46 = arith.constant 0.000000e+00 : f32
    %137 = vector.broadcast %cst_46 : f32 to vector<16x20xf32>
    %138 = arith.select %136, %133, %137 : vector<16x20xi1>, vector<16x20xf32>
    %139 = arith.mulf %123, %138 : vector<16x20xf32>
    %140 = vector.broadcast %114 : vector<16x1xf32> to vector<16x20xf32>
    %141 = vector.broadcast %0 : vector<1x20xf32> to vector<16x20xf32>
    %142 = arith.cmpf oeq, %140, %141 : vector<16x20xf32>
    %143 = arith.extui %142 : vector<16x20xi1> to vector<16x20xi32>
    %144 = arith.sitofp %143 : vector<16x20xi32> to vector<16x20xf32>
    %145 = arith.mulf %144, %139 : vector<16x20xf32>
    %146 = arith.addf %110, %145 : vector<16x20xf32>
    %c0_47 = arith.constant 0 : index
    %c0_48 = arith.constant 0 : index
    %147 = vector.load %arg7[%c0_47, %c0_48] : memref<20x32xf32, #tpu.memory_space<vmem>>, vector<20x32xf32>
    %cst_49 = arith.constant dense<0.000000e+00> : vector<16x32xf32>
    %148 = tpu.matmul %146, %147, %cst_49 {dimension_numbers = #tpu.dot_dimension_numbers<[1], [0], [0], [1], [0, 0, 1, 1], [], []>} : vector<16x20xf32>, vector<20x32xf32>, vector<16x32xf32> -> vector<16x32xf32>
    %c0_50 = arith.constant 0 : index
    %c0_51 = arith.constant 0 : index
    %149 = vector.load %arg8[%c0_50, %c0_51] : memref<1x32xf32, #tpu.memory_space<vmem>>, vector<1x32xf32>
    %150 = vector.broadcast %149 : vector<1x32xf32> to vector<16x32xf32>
    %151 = arith.addf %148, %150 : vector<16x32xf32>
    %cst_52 = arith.constant 0.000000e+00 : f32
    %152 = vector.broadcast %cst_52 : f32 to vector<16x32xf32>
    %153 = arith.maximumf %151, %152 : vector<16x32xf32>
    %c0_53 = arith.constant 0 : index
    %c0_54 = arith.constant 0 : index
    %154 = vector.load %arg9[%c0_53, %c0_54] : memref<32x32xf32, #tpu.memory_space<vmem>>, vector<32x32xf32>
    %cst_55 = arith.constant dense<0.000000e+00> : vector<16x32xf32>
    %155 = tpu.matmul %153, %154, %cst_55 {dimension_numbers = #tpu.dot_dimension_numbers<[1], [0], [0], [1], [0, 0, 1, 1], [], []>} : vector<16x32xf32>, vector<32x32xf32>, vector<16x32xf32> -> vector<16x32xf32>
    %c0_56 = arith.constant 0 : index
    %c0_57 = arith.constant 0 : index
    %156 = vector.load %arg10[%c0_56, %c0_57] : memref<1x32xf32, #tpu.memory_space<vmem>>, vector<1x32xf32>
    %157 = vector.broadcast %156 : vector<1x32xf32> to vector<16x32xf32>
    %158 = arith.addf %155, %157 : vector<16x32xf32>
    %cst_58 = arith.constant 0.000000e+00 : f32
    %159 = vector.broadcast %cst_58 : f32 to vector<16x32xf32>
    %160 = arith.maximumf %158, %159 : vector<16x32xf32>
    %c0_59 = arith.constant 0 : index
    %c0_60 = arith.constant 0 : index
    %161 = vector.load %arg11[%c0_59, %c0_60] : memref<32x1xf32, #tpu.memory_space<vmem>>, vector<32x1xf32>
    %cst_61 = arith.constant dense<0.000000e+00> : vector<16x1xf32>
    %162 = tpu.matmul %160, %161, %cst_61 {dimension_numbers = #tpu.dot_dimension_numbers<[1], [0], [0], [1], [0, 0, 1, 1], [], []>} : vector<16x32xf32>, vector<32x1xf32>, vector<16x1xf32> -> vector<16x1xf32>
    %c0_62 = arith.constant 0 : index
    %c0_63 = arith.constant 0 : index
    %163 = vector.load %arg12[%c0_62, %c0_63] : memref<1x1xf32, #tpu.memory_space<vmem>>, vector<1x1xf32>
    %164 = vector.broadcast %163 : vector<1x1xf32> to vector<16x1xf32>
    %165 = arith.addf %162, %164 : vector<16x1xf32>
    %166 = vector.extract_strided_slice %165 {offsets = [0, 0], sizes = [8, 1], strides = [1, 1]} : vector<16x1xf32> to vector<8x1xf32>
    %cst_64 = arith.constant dense<0.000000e+00> : vector<1xf32>
    %167 = vector.multi_reduction <add>, %166, %cst_64 [0] : vector<8x1xf32> to vector<1xf32>
    %168 = vector.shape_cast %167 : vector<1xf32> to vector<1x1xf32>
    %169 = vector.extract_strided_slice %165 {offsets = [8, 0], sizes = [8, 1], strides = [1, 1]} : vector<16x1xf32> to vector<8x1xf32>
    %cst_65 = arith.constant dense<0.000000e+00> : vector<1xf32>
    %170 = vector.multi_reduction <add>, %169, %cst_65 [0] : vector<8x1xf32> to vector<1xf32>
    %171 = vector.shape_cast %170 : vector<1xf32> to vector<1x1xf32>
    %172 = tpu.concatenate %168, %171 in 0 : vector<1x1xf32>, vector<1x1xf32> -> vector<2x1xf32>
    %c0_66 = arith.constant 0 : index
    %c0_67 = arith.constant 0 : index
    %c0_68 = arith.constant 0 : index
    %173 = vector.load %arg13[%c0_66, %c0_67, %c0_68] : memref<1x2x1xf32, #tpu.memory_space<vmem>>, vector<1x2x1xf32>
    %174 = vector.shape_cast %173 : vector<1x2x1xf32> to vector<2x1xf32>
    %175 = vector.shape_cast %172 : vector<2x1xf32> to vector<1x2x1xf32>
    tpu.vector_store %arg13[%c0_66, %c0_67, %c0_68], %175 {strides = array<i32>} : memref<1x2x1xf32, #tpu.memory_space<vmem>>, vector<1x2x1xf32>,
    return
  }
  func.func @transform_0(%arg0: i32) -> (i32, i32, i32) {
    %c0_i32 = arith.constant 0 : i32
    %c0_i32_0 = arith.constant 0 : i32
    %c0_i32_1 = arith.constant 0 : i32
    return %c0_i32, %arg0, %c0_i32_0 : i32, i32, i32
  }
  func.func @transform_1(%arg0: i32) -> (i32, i32, i32) {
    %c0_i32 = arith.constant 0 : i32
    %c0_i32_0 = arith.constant 0 : i32
    %c0_i32_1 = arith.constant 0 : i32
    return %c0_i32, %arg0, %c0_i32_0 : i32, i32, i32
  }
  func.func @transform_2(%arg0: i32) -> (i32, i32) {
    %c0_i32 = arith.constant 0 : i32
    %c0_i32_0 = arith.constant 0 : i32
    %c0_i32_1 = arith.constant 0 : i32
    return %c0_i32, %c0_i32_0 : i32, i32
  }
  func.func @transform_3(%arg0: i32) -> (i32, i32) {
    %c0_i32 = arith.constant 0 : i32
    %c0_i32_0 = arith.constant 0 : i32
    %c0_i32_1 = arith.constant 0 : i32
    return %c0_i32, %c0_i32_0 : i32, i32
  }
  func.func @transform_4(%arg0: i32) -> (i32, i32) {
    %c0_i32 = arith.constant 0 : i32
    %c0_i32_0 = arith.constant 0 : i32
    %c0_i32_1 = arith.constant 0 : i32
    return %c0_i32, %c0_i32_0 : i32, i32
  }
  func.func @transform_5(%arg0: i32) -> (i32, i32) {
    %c0_i32 = arith.constant 0 : i32
    %c0_i32_0 = arith.constant 0 : i32
    %c0_i32_1 = arith.constant 0 : i32
    return %c0_i32, %c0_i32_0 : i32, i32
  }
  func.func @transform_6(%arg0: i32) -> (i32, i32) {
    %c0_i32 = arith.constant 0 : i32
    %c0_i32_0 = arith.constant 0 : i32
    %c0_i32_1 = arith.constant 0 : i32
    return %c0_i32, %c0_i32_0 : i32, i32
  }
  func.func @transform_7(%arg0: i32) -> (i32, i32) {
    %c0_i32 = arith.constant 0 : i32
    %c0_i32_0 = arith.constant 0 : i32
    %c0_i32_1 = arith.constant 0 : i32
    return %c0_i32, %c0_i32_0 : i32, i32
  }
  func.func @transform_8(%arg0: i32) -> (i32, i32) {
    %c0_i32 = arith.constant 0 : i32
    %c0_i32_0 = arith.constant 0 : i32
    %c0_i32_1 = arith.constant 0 : i32
    return %c0_i32, %c0_i32_0 : i32, i32
  }
  func.func @transform_9(%arg0: i32) -> (i32, i32) {
    %c0_i32 = arith.constant 0 : i32
    %c0_i32_0 = arith.constant 0 : i32
    %c0_i32_1 = arith.constant 0 : i32
    return %c0_i32, %c0_i32_0 : i32, i32
  }
  func.func @transform_10(%arg0: i32) -> (i32, i32) {
    %c0_i32 = arith.constant 0 : i32
    %c0_i32_0 = arith.constant 0 : i32
    %c0_i32_1 = arith.constant 0 : i32
    return %c0_i32, %c0_i32_0 : i32, i32
  }
  func.func @transform_11(%arg0: i32) -> (i32, i32) {
    %c0_i32 = arith.constant 0 : i32
    %c0_i32_0 = arith.constant 0 : i32
    %c0_i32_1 = arith.constant 0 : i32
    return %c0_i32, %c0_i32_0 : i32, i32
  }
  func.func @transform_12(%arg0: i32) -> (i32, i32, i32) {
    %c0_i32 = arith.constant 0 : i32
    %c0_i32_0 = arith.constant 0 : i32
    %c0_i32_1 = arith.constant 0 : i32
    return %arg0, %c0_i32, %c0_i32_0 : i32, i32, i32
  }
}

</mosaic_0001>

<llo_original>
// kernel: tpu_custom_call.1
$region0: #{tpu_custom_call.1}
  #allocation0 [shape = 'u32[]', space=smem, size = 0x4, offset = 0x4, fixed_abs, tag = 'smem constant byte address 0x4 - core index']
  #allocation1 [shape = 'u32[144,128]{1,0:T(1,128)}', space=vmem, size = 0x12000, scoped, tag = 'internal scratch']
  #allocation2 [shape = 'f32[1,1]{1,0:T(1,128)S(1)}', space=vmem, size = 0x200, scoped, tag = 'scoped memory for tpu_custom_call.1']
  %s0 = inlined_call_operand.vmem [shape: f32[4,32,1], index: 0, kind: input, shape index: {}]
  %s1 = inlined_call_operand.vmem [shape: f32[4,32,1], index: 1, kind: input, shape index: {}]
  %s2 = inlined_call_operand.vmem [shape: f32[1,20], index: 2, kind: input, shape index: {}]
  %s3 = inlined_call_operand.vmem [shape: f32[1,20], index: 3, kind: input, shape index: {}]
  %s4 = inlined_call_operand.vmem [shape: f32[1,20], index: 4, kind: input, shape index: {}]
  %s5 = inlined_call_operand.vmem [shape: f32[1,20], index: 5, kind: input, shape index: {}]
  %s6 = inlined_call_operand.vmem [shape: f32[20,32], index: 6, kind: input, shape index: {}]
  %s7 = inlined_call_operand.vmem [shape: f32[1,32], index: 7, kind: input, shape index: {}]
  %s8 = inlined_call_operand.vmem [shape: f32[32,32], index: 8, kind: input, shape index: {}]
  %s9 = inlined_call_operand.vmem [shape: f32[1,32], index: 9, kind: input, shape index: {}]
  %s10 = inlined_call_operand.vmem [shape: f32[32,1], index: 10, kind: input, shape index: {}]
  %s11 = inlined_call_operand.<no memory space> [shape: f32[1,1], index: 11, kind: input, shape index: {}]
  %s12 = inlined_call_operand.vmem [shape: f32[2,2,1], index: 12, kind: output, shape index: {}]
  %s13 = sld [smem:[#allocation0]]
  $region157: #{tpu_custom_call.1} parent=0
    _
  %s15 = ssub.s32 1, %s13
  %s16 = scalar_select 0, %s15, %s13
  %v17 = vstv %s11
  %18 = vst [vmem:[#allocation2] sm:$0x1] %v17
  $region1: #{tpu_custom_call.1} parent=0
    #allocation3 [shape = 'u8[65536]{0}', space=vmem, size = 0x10000, scoped, tag = 'input window, operand 0']
    #allocation4 [shape = 'u8[65536]{0}', space=vmem, size = 0x10000, scoped, tag = 'input window, operand 1']
    loop: start=0, step=1, limit=4
    $region2: #{tpu_custom_call.1} parent=1 // loop_pre_header
      _
    $region3: #{tpu_custom_call.1} parent=1 // loop_header
      %s20 = sphi 0, %s24
      %p21 = scmp.ge.s32.totalorder %s20, 4
      %s30 = sphi 0, %s32
      %s33 = sphi 0, %s30
      %s34 = sphi 0, %s33
      %s50 = sphi 0, %s34
      %s56 = sphi 0, %s58
      %s59 = sphi 0, %s56
      %s60 = sphi 0, %s59
      %s76 = sphi 0, %s60
      %s80 = sphi 0, %s80
      %s82 = sphi 0, %s80
      %s83 = sphi 0, %s82
      %s97 = sphi 0, %s83
      %s101 = sphi 0, %s101
      %s103 = sphi 0, %s101
      %s104 = sphi 0, %s103
      %s118 = sphi 0, %s104
      %s122 = sphi 0, %s122
      %s124 = sphi 0, %s122
      %s125 = sphi 0, %s124
      %s139 = sphi 0, %s125
      %s143 = sphi 0, %s143
      %s145 = sphi 0, %s143
      %s146 = sphi 0, %s145
      %s160 = sphi 0, %s146
      %s164 = sphi 0, %s164
      %s166 = sphi 0, %s164
      %s167 = sphi 0, %s166
      %s181 = sphi 0, %s167
      %s185 = sphi 0, %s185
      %s187 = sphi 0, %s185
      %s188 = sphi 0, %s187
      %s202 = sphi 0, %s188
      %s206 = sphi 0, %s206
      %s208 = sphi 0, %s206
      %s209 = sphi 0, %s208
      %s223 = sphi 0, %s209
      %s227 = sphi 0, %s227
      %s229 = sphi 0, %s227
      %s230 = sphi 0, %s229
      %s244 = sphi 0, %s230
      %s248 = sphi 0, %s248
      %s250 = sphi 0, %s248
      %s251 = sphi 0, %s250
      %s265 = sphi 0, %s251
      %s269 = sphi 0, %s269
      %s271 = sphi 0, %s269
      %s272 = sphi 0, %s271
      %s286 = sphi 0, %s272
      %s292 = sphi 0, %s294
      %s295 = sphi 0, %s292
      %s296 = sphi 0, %s295
      %s312 = sphi 0, %s296
    $region4: #{tpu_custom_call.1} parent=1 // loop_header_branch
      %23 = sbr.rel (%p21) target = $region8
    $region5: #{tpu_custom_call.1} parent=1 // loop_body
      %s25 = ssub.s32 %s20, 1
      %s26 = ssub.s32 %s20, 2
      %s27 = sadd.s32 %s20, 1
      %s28 = ssub.s32 %s20, %s27
      %p29 = scmp.eq.s32.totalorder %s28, 0
      %s31 = sadd.s32 %s30, 1
      %s32 = scalar_select %p29, %s30, %s31
      %p35 = pneg %p29
      %p36 = scmp.eq.s32.totalorder %s20, 1
      %p37 = por %p35, %p36
      %p38 = scmp.ne.s32.totalorder %s30, %s33
      %p39 = scmp.eq.s32.totalorder %s20, 0
      %p40 = por %p38, %p39
      %p41 = scmp.ne.s32.totalorder %s30, %s33
      %p42 = scmp.eq.s32.totalorder %s25, 1
      %p43 = por %p41, %p42
      %p44 = scmp.ne.s32.totalorder %s33, %s34
      %p45 = scmp.eq.s32.totalorder %s25, 0
      %p46 = por %p44, %p45
      %p47 = scmp.ne.s32.totalorder %s33, %s34
      %p48 = scmp.eq.s32.totalorder %s26, 1
      %p49 = por %p47, %p48
      %p51 = scmp.ne.s32.totalorder %s34, %s50
      %p52 = scmp.eq.s32.totalorder %s26, 0
      %p53 = por %p51, %p52
      %s54 = ssub.s32 %s20, %s27
      %p55 = scmp.eq.s32.totalorder %s54, 0
      %s57 = sadd.s32 %s56, 1
      %s58 = scalar_select %p55, %s56, %s57
      %p61 = pneg %p55
      %p62 = scmp.eq.s32.totalorder %s20, 1
      %p63 = por %p61, %p62
      %p64 = scmp.ne.s32.totalorder %s56, %s59
      %p65 = scmp.eq.s32.totalorder %s20, 0
      %p66 = por %p64, %p65
      %p67 = scmp.ne.s32.totalorder %s56, %s59
      %p68 = scmp.eq.s32.totalorder %s25, 1
      %p69 = por %p67, %p68
      %p70 = scmp.ne.s32.totalorder %s59, %s60
      %p71 = scmp.eq.s32.totalorder %s25, 0
      %p72 = por %p70, %p71
      %p73 = scmp.ne.s32.totalorder %s59, %s60
      %p74 = scmp.eq.s32.totalorder %s26, 1
      %p75 = por %p73, %p74
      %p77 = scmp.ne.s32.totalorder %s60, %s76
      %p78 = scmp.eq.s32.totalorder %s26, 0
      %p79 = por %p77, %p78
      %s81 = sadd.s32 %s80, 1
      %p84 = scmp.eq.s32.totalorder %s20, 1
      %p85 = scmp.ne.s32.totalorder %s80, %s82
      %p86 = scmp.eq.s32.totalorder %s20, 0
      %p87 = por %p85, %p86
      %p88 = scmp.ne.s32.totalorder %s80, %s82
      %p89 = scmp.eq.s32.totalorder %s25, 1
      %p90 = por %p88, %p89
      %p91 = scmp.ne.s32.totalorder %s82, %s83
      %p92 = scmp.eq.s32.totalorder %s25, 0
      %p93 = por %p91, %p92
      %p94 = scmp.ne.s32.totalorder %s82, %s83
      %p95 = scmp.eq.s32.totalorder %s26, 1
      %p96 = por %p94, %p95
      %p98 = scmp.ne.s32.totalorder %s83, %s97
      %p99 = scmp.eq.s32.totalorder %s26, 0
      %p100 = por %p98, %p99
      %s102 = sadd.s32 %s101, 1
      %p105 = scmp.eq.s32.totalorder %s20, 1
      %p106 = scmp.ne.s32.totalorder %s101, %s103
      %p107 = scmp.eq.s32.totalorder %s20, 0
      %p108 = por %p106, %p107
      %p109 = scmp.ne.s32.totalorder %s101, %s103
      %p110 = scmp.eq.s32.totalorder %s25, 1
      %p111 = por %p109, %p110
      %p112 = scmp.ne.s32.totalorder %s103, %s104
      %p113 = scmp.eq.s32.totalorder %s25, 0
      %p114 = por %p112, %p113
      %p115 = scmp.ne.s32.totalorder %s103, %s104
      %p116 = scmp.eq.s32.totalorder %s26, 1
      %p117 = por %p115, %p116
      %p119 = scmp.ne.s32.totalorder %s104, %s118
      %p120 = scmp.eq.s32.totalorder %s26, 0
      %p121 = por %p119, %p120
      %s123 = sadd.s32 %s122, 1
      %p126 = scmp.eq.s32.totalorder %s20, 1
      %p127 = scmp.ne.s32.totalorder %s122, %s124
      %p128 = scmp.eq.s32.totalorder %s20, 0
      %p129 = por %p127, %p128
      %p130 = scmp.ne.s32.totalorder %s122, %s124
      %p131 = scmp.eq.s32.totalorder %s25, 1
      %p132 = por %p130, %p131
      %p133 = scmp.ne.s32.totalorder %s124, %s125
      %p134 = scmp.eq.s32.totalorder %s25, 0
      %p135 = por %p133, %p134
      %p136 = scmp.ne.s32.totalorder %s124, %s125
      %p137 = scmp.eq.s32.totalorder %s26, 1
      %p138 = por %p136, %p137
      %p140 = scmp.ne.s32.totalorder %s125, %s139
      %p141 = scmp.eq.s32.totalorder %s26, 0
      %p142 = por %p140, %p141
      %s144 = sadd.s32 %s143, 1
      %p147 = scmp.eq.s32.totalorder %s20, 1
      %p148 = scmp.ne.s32.totalorder %s143, %s145
      %p149 = scmp.eq.s32.totalorder %s20, 0
      %p150 = por %p148, %p149
      %p151 = scmp.ne.s32.totalorder %s143, %s145
      %p152 = scmp.eq.s32.totalorder %s25, 1
      %p153 = por %p151, %p152
      %p154 = scmp.ne.s32.totalorder %s145, %s146
      %p155 = scmp.eq.s32.totalorder %s25, 0
      %p156 = por %p154, %p155
      %p157 = scmp.ne.s32.totalorder %s145, %s146
      %p158 = scmp.eq.s32.totalorder %s26, 1
      %p159 = por %p157, %p158
      %p161 = scmp.ne.s32.totalorder %s146, %s160
      %p162 = scmp.eq.s32.totalorder %s26, 0
      %p163 = por %p161, %p162
      %s165 = sadd.s32 %s164, 1
      %p168 = scmp.eq.s32.totalorder %s20, 1
      %p169 = scmp.ne.s32.totalorder %s164, %s166
      %p170 = scmp.eq.s32.totalorder %s20, 0
      %p171 = por %p169, %p170
      %p172 = scmp.ne.s32.totalorder %s164, %s166
      %p173 = scmp.eq.s32.totalorder %s25, 1
      %p174 = por %p172, %p173
      %p175 = scmp.ne.s32.totalorder %s166, %s167
      %p176 = scmp.eq.s32.totalorder %s25, 0
      %p177 = por %p175, %p176
      %p178 = scmp.ne.s32.totalorder %s166, %s167
      %p179 = scmp.eq.s32.totalorder %s26, 1
      %p180 = por %p178, %p179
      %p182 = scmp.ne.s32.totalorder %s167, %s181
      %p183 = scmp.eq.s32.totalorder %s26, 0
      %p184 = por %p182, %p183
      %s186 = sadd.s32 %s185, 1
      %p189 = scmp.eq.s32.totalorder %s20, 1
      %p190 = scmp.ne.s32.totalorder %s185, %s187
      %p191 = scmp.eq.s32.totalorder %s20, 0
      %p192 = por %p190, %p191
      %p193 = scmp.ne.s32.totalorder %s185, %s187
      %p194 = scmp.eq.s32.totalorder %s25, 1
      %p195 = por %p193, %p194
      %p196 = scmp.ne.s32.totalorder %s187, %s188
      %p197 = scmp.eq.s32.totalorder %s25, 0
      %p198 = por %p196, %p197
      %p199 = scmp.ne.s32.totalorder %s187, %s188
      %p200 = scmp.eq.s32.totalorder %s26, 1
      %p201 = por %p199, %p200
      %p203 = scmp.ne.s32.totalorder %s188, %s202
      %p204 = scmp.eq.s32.totalorder %s26, 0
      %p205 = por %p203, %p204
      %s207 = sadd.s32 %s206, 1
      %p210 = scmp.eq.s32.totalorder %s20, 1
      %p211 = scmp.ne.s32.totalorder %s206, %s208
      %p212 = scmp.eq.s32.totalorder %s20, 0
      %p213 = por %p211, %p212
      %p214 = scmp.ne.s32.totalorder %s206, %s208
      %p215 = scmp.eq.s32.totalorder %s25, 1
      %p216 = por %p214, %p215
      %p217 = scmp.ne.s32.totalorder %s208, %s209
      %p218 = scmp.eq.s32.totalorder %s25, 0
      %p219 = por %p217, %p218
      %p220 = scmp.ne.s32.totalorder %s208, %s209
      %p221 = scmp.eq.s32.totalorder %s26, 1
      %p222 = por %p220, %p221
      %p224 = scmp.ne.s32.totalorder %s209, %s223
      %p225 = scmp.eq.s32.totalorder %s26, 0
      %p226 = por %p224, %p225
      %s228 = sadd.s32 %s227, 1
      %p231 = scmp.eq.s32.totalorder %s20, 1
      %p232 = scmp.ne.s32.totalorder %s227, %s229
      %p233 = scmp.eq.s32.totalorder %s20, 0
      %p234 = por %p232, %p233
      %p235 = scmp.ne.s32.totalorder %s227, %s229
      %p236 = scmp.eq.s32.totalorder %s25, 1
      %p237 = por %p235, %p236
      %p238 = scmp.ne.s32.totalorder %s229, %s230
      %p239 = scmp.eq.s32.totalorder %s25, 0
      %p240 = por %p238, %p239
      %p241 = scmp.ne.s32.totalorder %s229, %s230
      %p242 = scmp.eq.s32.totalorder %s26, 1
      %p243 = por %p241, %p242
      %p245 = scmp.ne.s32.totalorder %s230, %s244
      %p246 = scmp.eq.s32.totalorder %s26, 0
      %p247 = por %p245, %p246
      %s249 = sadd.s32 %s248, 1
      %p252 = scmp.eq.s32.totalorder %s20, 1
      %p253 = scmp.ne.s32.totalorder %s248, %s250
      %p254 = scmp.eq.s32.totalorder %s20, 0
      %p255 = por %p253, %p254
      %p256 = scmp.ne.s32.totalorder %s248, %s250
      %p257 = scmp.eq.s32.totalorder %s25, 1
      %p258 = por %p256, %p257
      %p259 = scmp.ne.s32.totalorder %s250, %s251
      %p260 = scmp.eq.s32.totalorder %s25, 0
      %p261 = por %p259, %p260
      %p262 = scmp.ne.s32.totalorder %s250, %s251
      %p263 = scmp.eq.s32.totalorder %s26, 1
      %p264 = por %p262, %p263
      %p266 = scmp.ne.s32.totalorder %s251, %s265
      %p267 = scmp.eq.s32.totalorder %s26, 0
      %p268 = por %p266, %p267
      %s270 = sadd.s32 %s269, 1
      %p273 = scmp.eq.s32.totalorder %s20, 1
      %p274 = scmp.ne.s32.totalorder %s269, %s271
      %p275 = scmp.eq.s32.totalorder %s20, 0
      %p276 = por %p274, %p275
      %p277 = scmp.ne.s32.totalorder %s269, %s271
      %p278 = scmp.eq.s32.totalorder %s25, 1
      %p279 = por %p277, %p278
      %p280 = scmp.ne.s32.totalorder %s271, %s272
      %p281 = scmp.eq.s32.totalorder %s25, 0
      %p282 = por %p280, %p281
      %p283 = scmp.ne.s32.totalorder %s271, %s272
      %p284 = scmp.eq.s32.totalorder %s26, 1
      %p285 = por %p283, %p284
      %p287 = scmp.ne.s32.totalorder %s272, %s286
      %p288 = scmp.eq.s32.totalorder %s26, 0
      %p289 = por %p287, %p288
      %s290 = ssub.s32 %s20, %s27
      %p291 = scmp.eq.s32.totalorder %s290, 0
      %s293 = sadd.s32 %s292, 1
      %s294 = scalar_select %p291, %s292, %s293
      %p297 = pneg %p291
      %p298 = scmp.eq.s32.totalorder %s20, 1
      %p299 = por %p297, %p298
      %p300 = scmp.ne.s32.totalorder %s292, %s295
      %p301 = scmp.eq.s32.totalorder %s20, 0
      %p302 = por %p300, %p301
      %p303 = scmp.ne.s32.totalorder %s292, %s295
      %p304 = scmp.eq.s32.totalorder %s25, 1
      %p305 = por %p303, %p304
      %p306 = scmp.ne.s32.totalorder %s295, %s296
      %p307 = scmp.eq.s32.totalorder %s25, 0
      %p308 = por %p306, %p307
      %p309 = scmp.ne.s32.totalorder %s295, %s296
      %p310 = scmp.eq.s32.totalorder %s26, 1
      %p311 = por %p309, %p310
      %p313 = scmp.ne.s32.totalorder %s296, %s312
      %p314 = scmp.eq.s32.totalorder %s26, 0
      %p315 = por %p313, %p314
      %p316 = scmp.le.s32.totalorder 1, %s20
      %p317 = scmp.lt.s32.totalorder %s20, 3
      %p318 = pnand %p316, %p317
      %p319 = pneg %p318
      // Predicated region
      $region9: #{tpu_custom_call.1} parent=5 // pred_check
        _
      $region10: #{tpu_custom_call.1} parent=5 // pred_check_branch
        %321 = sbr.rel (%p318) target = $region12
      $region11: #{tpu_custom_call.1} parent=5 // pred_region
        %s322 = ssub.s32 %s20, 1
        // Predicated region
        $region13: #{tpu_custom_call.1} parent=11 // pred_check
          %p323 = pneg %p93
        $region14: #{tpu_custom_call.1} parent=11 // pred_check_branch
          %325 = sbr.rel (%p323) target = $region16
        $region15: #{tpu_custom_call.1} parent=11 // pred_region
          _
        $region16: #{tpu_custom_call.1} parent=11 // pred_fallthru
          _
        // Predicated region
        $region17: #{tpu_custom_call.1} parent=11 // pred_check
          %p326 = pneg %p114
        $region18: #{tpu_custom_call.1} parent=11 // pred_check_branch
          %328 = sbr.rel (%p326) target = $region20
        $region19: #{tpu_custom_call.1} parent=11 // pred_region
          _
        $region20: #{tpu_custom_call.1} parent=11 // pred_fallthru
          _
        // Predicated region
        $region21: #{tpu_custom_call.1} parent=11 // pred_check
          %p329 = pneg %p135
        $region22: #{tpu_custom_call.1} parent=11 // pred_check_branch
          %331 = sbr.rel (%p329) target = $region24
        $region23: #{tpu_custom_call.1} parent=11 // pred_region
          _
        $region24: #{tpu_custom_call.1} parent=11 // pred_fallthru
          _
        // Predicated region
        $region25: #{tpu_custom_call.1} parent=11 // pred_check
          %p332 = pneg %p156
        $region26: #{tpu_custom_call.1} parent=11 // pred_check_branch
          %334 = sbr.rel (%p332) target = $region28
        $region27: #{tpu_custom_call.1} parent=11 // pred_region
          _
        $region28: #{tpu_custom_call.1} parent=11 // pred_fallthru
          _
        // Predicated region
        $region29: #{tpu_custom_call.1} parent=11 // pred_check
          %p335 = pneg %p177
        $region30: #{tpu_custom_call.1} parent=11 // pred_check_branch
          %337 = sbr.rel (%p335) target = $region32
        $region31: #{tpu_custom_call.1} parent=11 // pred_region
          _
        $region32: #{tpu_custom_call.1} parent=11 // pred_fallthru
          _
        // Predicated region
        $region33: #{tpu_custom_call.1} parent=11 // pred_check
          %p338 = pneg %p198
        $region34: #{tpu_custom_call.1} parent=11 // pred_check_branch
          %340 = sbr.rel (%p338) target = $region36
        $region35: #{tpu_custom_call.1} parent=11 // pred_region
          _
        $region36: #{tpu_custom_call.1} parent=11 // pred_fallthru
          _
        // Predicated region
        $region37: #{tpu_custom_call.1} parent=11 // pred_check
          %p341 = pneg %p219
        $region38: #{tpu_custom_call.1} parent=11 // pred_check_branch
          %343 = sbr.rel (%p341) target = $region40
        $region39: #{tpu_custom_call.1} parent=11 // pred_region
          _
        $region40: #{tpu_custom_call.1} parent=11 // pred_fallthru
          _
        // Predicated region
        $region41: #{tpu_custom_call.1} parent=11 // pred_check
          %p344 = pneg %p240
        $region42: #{tpu_custom_call.1} parent=11 // pred_check_branch
          %346 = sbr.rel (%p344) target = $region44
        $region43: #{tpu_custom_call.1} parent=11 // pred_region
          _
        $region44: #{tpu_custom_call.1} parent=11 // pred_fallthru
          _
        // Predicated region
        $region45: #{tpu_custom_call.1} parent=11 // pred_check
          %p347 = pneg %p261
        $region46: #{tpu_custom_call.1} parent=11 // pred_check_branch
          %349 = sbr.rel (%p347) target = $region48
        $region47: #{tpu_custom_call.1} parent=11 // pred_region
          _
        $region48: #{tpu_custom_call.1} parent=11 // pred_fallthru
          _
        // Predicated region
        $region49: #{tpu_custom_call.1} parent=11 // pred_check
          %p350 = pneg %p282
        $region50: #{tpu_custom_call.1} parent=11 // pred_check_branch
          %352 = sbr.rel (%p350) target = $region52
        $region51: #{tpu_custom_call.1} parent=11 // pred_region
          _
        $region52: #{tpu_custom_call.1} parent=11 // pred_fallthru
          _
      $region12: #{tpu_custom_call.1} parent=5 // pred_fallthru
        _
      %p353 = scmp.lt.s32.totalorder %s20, 2
      // Predicated region
      $region53: #{tpu_custom_call.1} parent=5 // pred_check
        %p354 = pneg %p353
      $region54: #{tpu_custom_call.1} parent=5 // pred_check_branch
        %356 = sbr.rel (%p354) target = $region56
      $region55: #{tpu_custom_call.1} parent=5 // pred_region
        // Predicated region
        $region57: #{tpu_custom_call.1} parent=55 // pred_check
          %p357 = pneg %p40
        $region58: #{tpu_custom_call.1} parent=55 // pred_check_branch
          %359 = sbr.rel (%p357) target = $region60
        $region59: #{tpu_custom_call.1} parent=55 // pred_region
          %s360 = sand.u32 %s30, 1
          %s361 = sand.u32 %s30, 1
          %s362 = smul.addr %s361, 64
          %s363 = scalar_lea.vmem [#allocation3], %s362
          %s364 = smul.u32 2, %s20
          %s365 = smul.addr %s364, 8
          %s366 = scalar_lea.vmem %s0, %s365
          // Predicated region
          $region61: #{tpu_custom_call.1} parent=59 // pred_check
            _
          $region62: #{tpu_custom_call.1} parent=59 // pred_check_branch
            %368 = sbr.rel (0) target = $region64
          $region63: #{tpu_custom_call.1} parent=59 // pred_region
            // Predicated region
            $region65: #{tpu_custom_call.1} parent=63 // pred_check
              _
            $region66: #{tpu_custom_call.1} parent=63 // pred_check_branch
              %370 = sbr.rel (0) target = $region68
            $region67: #{tpu_custom_call.1} parent=63 // pred_region
              // Predicated region
              $region80: #{tpu_custom_call.1} parent=67 // pred_check
                _
              $region81: #{tpu_custom_call.1} parent=67 // pred_check_branch
                %399 = sbr.rel (0) target = $region83
              $region82: #{tpu_custom_call.1} parent=67 // pred_region
                loop: start=0, step=1, limit=1
                $region84: #{tpu_custom_call.1} parent=82 // loop_pre_header
                  _
                $region85: #{tpu_custom_call.1} parent=82 // loop_header
                  %s401 = sphi 0, %s405
                  %p402 = scmp.ge.s32.totalorder %s401, 1
                  %s406 = sphi %s366, %s366
                  %s407 = sphi %s363, %s363
                $region86: #{tpu_custom_call.1} parent=82 // loop_header_branch
                  %404 = sbr.rel (%p402) target = $region90
                $region87: #{tpu_custom_call.1} parent=82 // loop_body
                  %v408 = vld [vmem:[%s406] sm:$0xff]
                  %409 = vst [vmem:[%s407] sm:$0xff] %v408
                  %v410 = vld [vmem:[%s406 + $0x8] sm:$0xff]
                  %411 = vst [vmem:[%s407 + $0x8] sm:$0xff] %v410
                  %v412 = vld [vmem:[%s406 + $0x20] sm:$0xff]
                  %413 = vst [vmem:[%s407 + $0x10] sm:$0xff] %v412
                  %v414 = vld [vmem:[%s406 + $0x28] sm:$0xff]
                  %415 = vst [vmem:[%s407 + $0x18] sm:$0xff] %v414
                  %v416 = vld [vmem:[%s406 + $0x40] sm:$0xff]
                  %417 = vst [vmem:[%s407 + $0x20] sm:$0xff] %v416
                  %v418 = vld [vmem:[%s406 + $0x48] sm:$0xff]
                  %419 = vst [vmem:[%s407 + $0x28] sm:$0xff] %v418
                  %v420 = vld [vmem:[%s406 + $0x60] sm:$0xff]
                  %421 = vst [vmem:[%s407 + $0x30] sm:$0xff] %v420
                  %v422 = vld [vmem:[%s406 + $0x68] sm:$0xff]
                  %423 = vst [vmem:[%s407 + $0x38] sm:$0xff] %v422
                $region88: #{tpu_custom_call.1} parent=82 // loop_footer
                  %s405 = sadd.s32 1, %s401
                $region89: #{tpu_custom_call.1} parent=82 // loop_footer_branch
                  %400 = sbr.rel target = $region85
                $region90: #{tpu_custom_call.1} parent=82 // loop_exit
                  _
              $region83: #{tpu_custom_call.1} parent=67 // pred_fallthru
                _
              // Predicated region
              $region91: #{tpu_custom_call.1} parent=67 // pred_check
                _
              $region92: #{tpu_custom_call.1} parent=67 // pred_check_branch
                %425 = sbr.rel target = $region94
              $region93: #{tpu_custom_call.1} parent=67 // pred_region
                _
              $region94: #{tpu_custom_call.1} parent=67 // pred_fallthru
                _
            $region68: #{tpu_custom_call.1} parent=63 // pred_fallthru
              _
            // Predicated region
            $region69: #{tpu_custom_call.1} parent=63 // pred_check
              _
            $region70: #{tpu_custom_call.1} parent=63 // pred_check_branch
              %372 = sbr.rel target = $region72
            $region71: #{tpu_custom_call.1} parent=63 // pred_region
              loop: start=0, step=1, limit=1
              $region73: #{tpu_custom_call.1} parent=71 // loop_pre_header
                _
              $region74: #{tpu_custom_call.1} parent=71 // loop_header
                %s375 = sphi 0, %s379
                %p376 = scmp.ge.s32.totalorder %s375, 1
                %s380 = sphi %s366, %s366
                %s381 = sphi %s363, %s363
              $region75: #{tpu_custom_call.1} parent=71 // loop_header_branch
                %378 = sbr.rel (%p376) target = $region79
              $region76: #{tpu_custom_call.1} parent=71 // loop_body
                %v382 = vld [vmem:[%s380] sm:$0xff]
                %383 = vst [vmem:[%s381] sm:$0xff] %v382
                %v384 = vld [vmem:[%s380 + $0x8] sm:$0xff]
                %385 = vst [vmem:[%s381 + $0x8] sm:$0xff] %v384
                %v386 = vld [vmem:[%s380 + $0x20] sm:$0xff]
                %387 = vst [vmem:[%s381 + $0x10] sm:$0xff] %v386
                %v388 = vld [vmem:[%s380 + $0x28] sm:$0xff]
                %389 = vst [vmem:[%s381 + $0x18] sm:$0xff] %v388
                %v390 = vld [vmem:[%s380 + $0x40] sm:$0xff]
                %391 = vst [vmem:[%s381 + $0x20] sm:$0xff] %v390
                %v392 = vld [vmem:[%s380 + $0x48] sm:$0xff]
                %393 = vst [vmem:[%s381 + $0x28] sm:$0xff] %v392
                %v394 = vld [vmem:[%s380 + $0x60] sm:$0xff]
                %395 = vst [vmem:[%s381 + $0x30] sm:$0xff] %v394
                %v396 = vld [vmem:[%s380 + $0x68] sm:$0xff]
                %397 = vst [vmem:[%s381 + $0x38] sm:$0xff] %v396
              $region77: #{tpu_custom_call.1} parent=71 // loop_footer
                %s379 = sadd.s32 1, %s375
              $region78: #{tpu_custom_call.1} parent=71 // loop_footer_branch
                %374 = sbr.rel target = $region74
              $region79: #{tpu_custom_call.1} parent=71 // loop_exit
                _
            $region72: #{tpu_custom_call.1} parent=63 // pred_fallthru
              _
          $region64: #{tpu_custom_call.1} parent=59 // pred_fallthru
            _
          %426 = vnop
        $region60: #{tpu_custom_call.1} parent=55 // pred_fallthru
          _
        // Predicated region
        $region95: #{tpu_custom_call.1} parent=55 // pred_check
          %p427 = pneg %p66
        $region96: #{tpu_custom_call.1} parent=55 // pred_check_branch
          %429 = sbr.rel (%p427) target = $region98
        $region97: #{tpu_custom_call.1} parent=55 // pred_region
          %s430 = sand.u32 %s56, 1
          %s431 = sand.u32 %s56, 1
          %s432 = smul.addr %s431, 64
          %s433 = scalar_lea.vmem [#allocation4], %s432
          %s434 = smul.u32 2, %s20
          %s435 = smul.addr %s434, 8
          %s436 = scalar_lea.vmem %s1, %s435
          // Predicated region
          $region99: #{tpu_custom_call.1} parent=97 // pred_check
            _
          $region100: #{tpu_custom_call.1} parent=97 // pred_check_branch
            %438 = sbr.rel (0) target = $region102
          $region101: #{tpu_custom_call.1} parent=97 // pred_region
            // Predicated region
            $region103: #{tpu_custom_call.1} parent=101 // pred_check
              _
            $region104: #{tpu_custom_call.1} parent=101 // pred_check_branch
              %440 = sbr.rel (0) target = $region106
            $region105: #{tpu_custom_call.1} parent=101 // pred_region
              // Predicated region
              $region118: #{tpu_custom_call.1} parent=105 // pred_check
                _
              $region119: #{tpu_custom_call.1} parent=105 // pred_check_branch
                %469 = sbr.rel (0) target = $region121
              $region120: #{tpu_custom_call.1} parent=105 // pred_region
                loop: start=0, step=1, limit=1
                $region122: #{tpu_custom_call.1} parent=120 // loop_pre_header
                  _
                $region123: #{tpu_custom_call.1} parent=120 // loop_header
                  %s471 = sphi 0, %s475
                  %p472 = scmp.ge.s32.totalorder %s471, 1
                  %s476 = sphi %s436, %s436
                  %s477 = sphi %s433, %s433
                $region124: #{tpu_custom_call.1} parent=120 // loop_header_branch
                  %474 = sbr.rel (%p472) target = $region128
                $region125: #{tpu_custom_call.1} parent=120 // loop_body
                  %v478 = vld [vmem:[%s476] sm:$0xff]
                  %479 = vst [vmem:[%s477] sm:$0xff] %v478
                  %v480 = vld [vmem:[%s476 + $0x8] sm:$0xff]
                  %481 = vst [vmem:[%s477 + $0x8] sm:$0xff] %v480
                  %v482 = vld [vmem:[%s476 + $0x20] sm:$0xff]
                  %483 = vst [vmem:[%s477 + $0x10] sm:$0xff] %v482
                  %v484 = vld [vmem:[%s476 + $0x28] sm:$0xff]
                  %485 = vst [vmem:[%s477 + $0x18] sm:$0xff] %v484
                  %v486 = vld [vmem:[%s476 + $0x40] sm:$0xff]
                  %487 = vst [vmem:[%s477 + $0x20] sm:$0xff] %v486
                  %v488 = vld [vmem:[%s476 + $0x48] sm:$0xff]
                  %489 = vst [vmem:[%s477 + $0x28] sm:$0xff] %v488
                  %v490 = vld [vmem:[%s476 + $0x60] sm:$0xff]
                  %491 = vst [vmem:[%s477 + $0x30] sm:$0xff] %v490
                  %v492 = vld [vmem:[%s476 + $0x68] sm:$0xff]
                  %493 = vst [vmem:[%s477 + $0x38] sm:$0xff] %v492
                $region126: #{tpu_custom_call.1} parent=120 // loop_footer
                  %s475 = sadd.s32 1, %s471
                $region127: #{tpu_custom_call.1} parent=120 // loop_footer_branch
                  %470 = sbr.rel target = $region123
                $region128: #{tpu_custom_call.1} parent=120 // loop_exit
                  _
              $region121: #{tpu_custom_call.1} parent=105 // pred_fallthru
                _
              // Predicated region
              $region129: #{tpu_custom_call.1} parent=105 // pred_check
                _
              $region130: #{tpu_custom_call.1} parent=105 // pred_check_branch
                %495 = sbr.rel target = $region132
              $region131: #{tpu_custom_call.1} parent=105 // pred_region
                _
              $region132: #{tpu_custom_call.1} parent=105 // pred_fallthru
                _
            $region106: #{tpu_custom_call.1} parent=101 // pred_fallthru
              _
            // Predicated region
            $region107: #{tpu_custom_call.1} parent=101 // pred_check
              _
            $region108: #{tpu_custom_call.1} parent=101 // pred_check_branch
              %442 = sbr.rel target = $region110
            $region109: #{tpu_custom_call.1} parent=101 // pred_region
              loop: start=0, step=1, limit=1
              $region111: #{tpu_custom_call.1} parent=109 // loop_pre_header
                _
              $region112: #{tpu_custom_call.1} parent=109 // loop_header
                %s445 = sphi 0, %s449
                %p446 = scmp.ge.s32.totalorder %s445, 1
                %s450 = sphi %s436, %s436
                %s451 = sphi %s433, %s433
              $region113: #{tpu_custom_call.1} parent=109 // loop_header_branch
                %448 = sbr.rel (%p446) target = $region117
              $region114: #{tpu_custom_call.1} parent=109 // loop_body
                %v452 = vld [vmem:[%s450] sm:$0xff]
                %453 = vst [vmem:[%s451] sm:$0xff] %v452
                %v454 = vld [vmem:[%s450 + $0x8] sm:$0xff]
                %455 = vst [vmem:[%s451 + $0x8] sm:$0xff] %v454
                %v456 = vld [vmem:[%s450 + $0x20] sm:$0xff]
                %457 = vst [vmem:[%s451 + $0x10] sm:$0xff] %v456
                %v458 = vld [vmem:[%s450 + $0x28] sm:$0xff]
                %459 = vst [vmem:[%s451 + $0x18] sm:$0xff] %v458
                %v460 = vld [vmem:[%s450 + $0x40] sm:$0xff]
                %461 = vst [vmem:[%s451 + $0x20] sm:$0xff] %v460
                %v462 = vld [vmem:[%s450 + $0x48] sm:$0xff]
                %463 = vst [vmem:[%s451 + $0x28] sm:$0xff] %v462
                %v464 = vld [vmem:[%s450 + $0x60] sm:$0xff]
                %465 = vst [vmem:[%s451 + $0x30] sm:$0xff] %v464
                %v466 = vld [vmem:[%s450 + $0x68] sm:$0xff]
                %467 = vst [vmem:[%s451 + $0x38] sm:$0xff] %v466
              $region115: #{tpu_custom_call.1} parent=109 // loop_footer
                %s449 = sadd.s32 1, %s445
              $region116: #{tpu_custom_call.1} parent=109 // loop_footer_branch
                %444 = sbr.rel target = $region112
              $region117: #{tpu_custom_call.1} parent=109 // loop_exit
                _
            $region110: #{tpu_custom_call.1} parent=101 // pred_fallthru
              _
          $region102: #{tpu_custom_call.1} parent=97 // pred_fallthru
            _
          %496 = vnop
        $region98: #{tpu_custom_call.1} parent=55 // pred_fallthru
          _
      $region56: #{tpu_custom_call.1} parent=5 // pred_fallthru
        _
      %p497 = scmp.le.s32.totalorder 1, %s20
      %p498 = scmp.lt.s32.totalorder %s20, 3
      %p499 = pnand %p497, %p498
      %p500 = pneg %p499
      // Predicated region
      $region133: #{tpu_custom_call.1} parent=5 // pred_check
        _
      $region134: #{tpu_custom_call.1} parent=5 // pred_check_branch
        %502 = sbr.rel (%p499) target = $region136
      $region135: #{tpu_custom_call.1} parent=5 // pred_region
        %s503 = ssub.s32 %s20, 1
        %s504 = sand.u32 %s33, 1
        %s505 = sand.u32 %s33, 1
        %s506 = smul.addr %s505, 64
        %s507 = scalar_lea.vmem [#allocation3], %s506
        // Predicated region
        $region137: #{tpu_custom_call.1} parent=135 // pred_check
          %p508 = pneg %p46
        $region138: #{tpu_custom_call.1} parent=135 // pred_check_branch
          %510 = sbr.rel (%p508) target = $region140
        $region139: #{tpu_custom_call.1} parent=135 // pred_region
          _
        $region140: #{tpu_custom_call.1} parent=135 // pred_fallthru
          _
        %s511 = sand.u32 %s59, 1
        %s512 = sand.u32 %s59, 1
        %s513 = smul.addr %s512, 64
        %s514 = scalar_lea.vmem [#allocation4], %s513
        // Predicated region
        $region141: #{tpu_custom_call.1} parent=135 // pred_check
          %p515 = pneg %p72
        $region142: #{tpu_custom_call.1} parent=135 // pred_check_branch
          %517 = sbr.rel (%p515) target = $region144
        $region143: #{tpu_custom_call.1} parent=135 // pred_region
          _
        $region144: #{tpu_custom_call.1} parent=135 // pred_fallthru
          _
        %s518 = sand.u32 %s33, 1
        %s519 = sand.u32 %s33, 1
        %s520 = smul.addr %s519, 64
        %s521 = scalar_lea.vmem [#allocation3], %s520
        %p522 = pneg %p46
        %p523 = pneg %p43
        %s524 = sand.u32 %s59, 1
        %s525 = sand.u32 %s59, 1
        %s526 = smul.addr %s525, 64
        %s527 = scalar_lea.vmem [#allocation4], %s526
        %p528 = pneg %p72
        %p529 = pneg %p69
        %p530 = pneg %p93
        %p531 = pneg %p90
        %p532 = pneg %p114
        %p533 = pneg %p111
        %p534 = pneg %p135
        %p535 = pneg %p132
        %p536 = pneg %p156
        %p537 = pneg %p153
        %p538 = pneg %p177
        %p539 = pneg %p174
        %p540 = pneg %p198
        %p541 = pneg %p195
        %p542 = pneg %p219
        %p543 = pneg %p216
        %p544 = pneg %p240
        %p545 = pneg %p237
        %p546 = pneg %p261
        %p547 = pneg %p258
        %p548 = pneg %p282
        %p549 = pneg %p279
        %p550 = pneg %p308
        %p551 = pneg %p305
        %p552 = scmp.lt.s32.totalorder %s25, 1
        %s553 = scalar_select %p552, %s25, 1
        %s554 = smul.addr %s553, 2
        %s555 = scalar_lea.vmem %s12, %s554
        %s556 = smul.u32 2, %s25
        %s557 = smul.u32 2, %s25
        %p558 = scmp.lt.s32.totalorder %s25, 1
        %s559 = scalar_select %p558, %s25, 1
        %s560 = smul.addr %s559, 2
        %s561 = scalar_lea.vmem %s12, %s560
        %v562 = vld [vmem:[%s2] sm:$0x1]
        %v563 = vld [vmem:[%s3] sm:$0x1]
        %v564 = vld [vmem:[%s4] sm:$0x1]
        %v565 = vld [vmem:[%s5] sm:$0x1]
        %v566 = vld [vmem:[%s514] sm:$0xff]
        %v567 = vld [vmem:[%s514 + $0x8] sm:$0xff]
        %v568 = vld [vmem:[%s507] sm:$0xff]
        %v569 = vld [vmem:[%s507 + $0x8] sm:$0xff]
        %v570 = vsub.f32 0.0, %v565
        %572 = vset.pattern.permute.xlu0 0
        %573 = vperm.xlu0 %572, %v566
        %v574 = vpop.permute.xlu0 %573
        %577 = vset.pattern.permute.xlu0 0
        %578 = vperm.xlu0 %577, %v567
        %v579 = vpop.permute.xlu0 %578
        %v582 = vlaneseq
        %v583 = vshrl.u32 %v582, 7
        %v584 = vsub.s32 0, %v583
        %v585 = vrot.slane %v564, %v584
        %v587 = vsub.f32 %v574, %v585
        %v588 = vsub.f32 %v579, %v585
        %v589 = vmul.f32 %v587, %v587
        %v590 = vmul.f32 %v588, %v588
        %v592 = vlaneseq
        %v593 = vshrl.u32 %v592, 7
        %v594 = vsub.s32 0, %v593
        %v595 = vrot.slane %v570, %v594
        %v597 = vmul.f32 %v595, %v589
        %v598 = vmul.f32 %v595, %v590
        %v599 = vmul.f32 %v597, 1.442695
        %v600 = vpow.pop %v599
        %v601 = vmul.f32 %v598, 1.442695
        %v602 = vpow.pop %v601
        %v603 = vmul.f32 %v566, 3.1415927
        %v604 = vmul.f32 %v567, 3.1415927
        %606 = vset.pattern.permute.xlu0 0
        %607 = vperm.xlu0 %606, %v603
        %v608 = vpop.permute.xlu0 %607
        %611 = vset.pattern.permute.xlu0 0
        %612 = vperm.xlu0 %611, %v604
        %v613 = vpop.permute.xlu0 %612
        %v616 = vlaneseq
        %v617 = vshrl.u32 %v616, 7
        %v618 = vsub.s32 0, %v617
        %v619 = vrot.slane %v563, %v618
        %v621 = vrcp.pop %v619
        %v622 = vmul.f32 %v608, %v621
        %v623 = vmul.f32 %v613, %v621
        %v624 = vand.u32 2147483647, %v622
        %vm625 = vcmp.le.f32.partialorder %v624, 0.7853982
        %vm626 = vcmp.lt.s32.totalorder %v622, 0
        %v627 = vand.u32 %v622, 2139095040
        %v628 = vshrl.u32 %v627, 23
        %v629 = vsub.s32 %v628, 127
        %v630 = vand.u32 2147483647, %v622
        %v631 = vand.u32 %v630, 8388607
        %v632 = vor.u32 %v631, 8388608
        %v633 = vsub.s32 0, %v632
        %v634 = vadd.s32 %v629, 1
        %vm635 = vcmp.gt.s32.totalorder %v634, 0
        %v636 = vsel %vm635, %v634, 0
        %v637 = vshrl.u32 %v636, 5
        %v638 = vand.u32 %v636, 31
        %v639 = vsub.s32 32, %v638
        %v640 = vshrl.u32 683565275, %v639
        %v641 = vshll.u32 683565275, %v638
        %v642 = vshrl.u32 2475754826, %v639
        %v643 = vor.u32 %v641, %v642
        %v644 = vshll.u32 2475754826, %v638
        %v645 = vshrl.u32 2131351028, %v639
        %v646 = vor.u32 %v644, %v645
        %v647 = vshll.u32 2131351028, %v638
        %v648 = vshrl.u32 2102212464, %v639
        %v649 = vor.u32 %v647, %v648
        %v650 = vshll.u32 2102212464, %v638
        %v651 = vshrl.u32 920167782, %v639
        %v652 = vor.u32 %v650, %v651
        %v653 = vshll.u32 920167782, %v638
        %v654 = vshrl.u32 1326507024, %v639
        %v655 = vor.u32 %v653, %v654
        %vm656 = vcmp.lt.s32.totalorder %v637, 1
        %vm657 = vcmp.lt.s32.totalorder %v637, 2
        %vm658 = vcmp.lt.s32.totalorder %v637, 3
        %vm659 = vcmp.lt.s32.totalorder %v637, 4
        %v660 = vsel %vm656, %v640, %v643
        %v661 = vsel %vm659, %v649, 2102212464
        %v662 = vsel %vm658, %v646, %v661
        %v663 = vsel %vm657, %v660, %v662
        %v664 = vsel %vm656, %v643, %v646
        %v665 = vsel %vm659, %v652, 920167782
        %v666 = vsel %vm658, %v649, %v665
        %v667 = vsel %vm657, %v664, %v666
        %v668 = vsel %vm656, %v646, %v649
        %v669 = vsel %vm659, %v655, 1326507024
        %v670 = vsel %vm658, %v652, %v669
        %v671 = vsel %vm657, %v668, %v670
        %v672 = vshll.u32 %v632, 8
        %v673 = vmul.u32.u64.compose %v672, %v671
        %v674 = vextract.low.u32 %v673
        %v675 = vextract.high.u32 %v673
        %v676 = vmul.u32.u64.compose %v672, %v667
        %v677 = vextract.low.u32 %v676
        %v678 = vextract.high.u32 %v676
        %v679 = vmul.u32 %v672, %v663
        %v680 = vadd.s32 %v675, %v677
        %vm681 = vc.u32 %v675, %v677
        %v682 = vadd.s32 %v678, 1
        %v683 = vsel %vm681, %v682, %v678
        %v684 = vadd.s32 %v679, %v683
        %v685 = vadd.s32 %v684, 536870912
        %v686 = vshrl.u32 %v685, 30
        %v687 = vshll.u32 %v686, 30
        %v688 = vsub.s32 %v684, %v687
        %vm689 = vcmp.lt.s32.totalorder %v688, 0
        %v690 = vsub.s32 0, %v688
        %v691 = vsel %vm689, %v690, %v688
        %v692 = vclz %v691
        %v693 = vsub.s32 %v692, 2
        %vm694 = vcmp.gt.s32.totalorder 0, %v693
        %v695 = vsel %vm694, 0, %v693
        %v696 = vsub.s32 32, %v695
        %v697 = vshll.u32 %v688, %v695
        %v698 = vshrl.u32 %v680, %v696
        %v699 = vor.u32 %v697, %v698
        %v700 = vsub.s32 4294967266, %v695
        %v701 = vadd.s32 %v700, 127
        %v702 = vshll.u32 %v701, 23
        %v703 = vor.u32 4788187, %v702
        %v704 = vand.u32 2147483647, %v703
        %v706 = vcvt.s32.f32 %v699
        %v707 = vmul.f32 %v706, %v704
        %v708 = vxor.u32 %v707, 2147483648
        %v709 = vsel %vm626, %v708, %v707
        %v710 = vsub.s32 4, %v686
        %v711 = vsel %vm626, %v710, %v686
        %v712 = vsel %vm625, %v622, %v709
        %v713 = vsel %vm625, 0, %v711
        %v714 = vcosq.f32.pop %v712
        %v715 = vsinq.f32.pop %v712
        %vm716 = vweird.f32 %v622
        %v717 = vand.u32 %v713, 3
        %vm718 = vcmp.lt.s32.totalorder %v717, 2
        %vm719 = vcmp.eq.s32.totalorder %v717, 0
        %v720 = vxor.u32 %v715, 2147483648
        %v721 = vsel %vm719, %v714, %v720
        %vm722 = vcmp.eq.s32.totalorder %v717, 2
        %v723 = vxor.u32 %v714, 2147483648
        %v724 = vsel %vm722, %v723, %v715
        %v725 = vsel %vm718, %v721, %v724
        %v726 = vsel %vm716, nan, %v725
        %v727 = vand.u32 2147483647, %v623
        %vm728 = vcmp.le.f32.partialorder %v727, 0.7853982
        %vm729 = vcmp.lt.s32.totalorder %v623, 0
        %v730 = vand.u32 %v623, 2139095040
        %v731 = vshrl.u32 %v730, 23
        %v732 = vsub.s32 %v731, 127
        %v733 = vand.u32 2147483647, %v623
        %v734 = vand.u32 %v733, 8388607
        %v735 = vor.u32 %v734, 8388608
        %v736 = vsub.s32 0, %v735
        %v737 = vadd.s32 %v732, 1
        %vm738 = vcmp.gt.s32.totalorder %v737, 0
        %v739 = vsel %vm738, %v737, 0
        %v740 = vshrl.u32 %v739, 5
        %v741 = vand.u32 %v739, 31
        %v742 = vsub.s32 32, %v741
        %v743 = vshrl.u32 683565275, %v742
        %v744 = vshll.u32 683565275, %v741
        %v745 = vshrl.u32 2475754826, %v742
        %v746 = vor.u32 %v744, %v745
        %v747 = vshll.u32 2475754826, %v741
        %v748 = vshrl.u32 2131351028, %v742
        %v749 = vor.u32 %v747, %v748
        %v750 = vshll.u32 2131351028, %v741
        %v751 = vshrl.u32 2102212464, %v742
        %v752 = vor.u32 %v750, %v751
        %v753 = vshll.u32 2102212464, %v741
        %v754 = vshrl.u32 920167782, %v742
        %v755 = vor.u32 %v753, %v754
        %v756 = vshll.u32 920167782, %v741
        %v757 = vshrl.u32 1326507024, %v742
        %v758 = vor.u32 %v756, %v757
        %vm759 = vcmp.lt.s32.totalorder %v740, 1
        %vm760 = vcmp.lt.s32.totalorder %v740, 2
        %vm761 = vcmp.lt.s32.totalorder %v740, 3
        %vm762 = vcmp.lt.s32.totalorder %v740, 4
        %v763 = vsel %vm759, %v743, %v746
        %v764 = vsel %vm762, %v752, 2102212464
        %v765 = vsel %vm761, %v749, %v764
        %v766 = vsel %vm760, %v763, %v765
        %v767 = vsel %vm759, %v746, %v749
        %v768 = vsel %vm762, %v755, 920167782
        %v769 = vsel %vm761, %v752, %v768
        %v770 = vsel %vm760, %v767, %v769
        %v771 = vsel %vm759, %v749, %v752
        %v772 = vsel %vm762, %v758, 1326507024
        %v773 = vsel %vm761, %v755, %v772
        %v774 = vsel %vm760, %v771, %v773
        %v775 = vshll.u32 %v735, 8
        %v776 = vmul.u32.u64.compose %v775, %v774
        %v777 = vextract.low.u32 %v776
        %v778 = vextract.high.u32 %v776
        %v779 = vmul.u32.u64.compose %v775, %v770
        %v780 = vextract.low.u32 %v779
        %v781 = vextract.high.u32 %v779
        %v782 = vmul.u32 %v775, %v766
        %v783 = vadd.s32 %v778, %v780
        %vm784 = vc.u32 %v778, %v780
        %v785 = vadd.s32 %v781, 1
        %v786 = vsel %vm784, %v785, %v781
        %v787 = vadd.s32 %v782, %v786
        %v788 = vadd.s32 %v787, 536870912
        %v789 = vshrl.u32 %v788, 30
        %v790 = vshll.u32 %v789, 30
        %v791 = vsub.s32 %v787, %v790
        %vm792 = vcmp.lt.s32.totalorder %v791, 0
        %v793 = vsub.s32 0, %v791
        %v794 = vsel %vm792, %v793, %v791
        %v795 = vclz %v794
        %v796 = vsub.s32 %v795, 2
        %vm797 = vcmp.gt.s32.totalorder 0, %v796
        %v798 = vsel %vm797, 0, %v796
        %v799 = vsub.s32 32, %v798
        %v800 = vshll.u32 %v791, %v798
        %v801 = vshrl.u32 %v783, %v799
        %v802 = vor.u32 %v800, %v801
        %v803 = vsub.s32 4294967266, %v798
        %v804 = vadd.s32 %v803, 127
        %v805 = vshll.u32 %v804, 23
        %v806 = vor.u32 4788187, %v805
        %v807 = vand.u32 2147483647, %v806
        %v809 = vcvt.s32.f32 %v802
        %v810 = vmul.f32 %v809, %v807
        %v811 = vxor.u32 %v810, 2147483648
        %v812 = vsel %vm729, %v811, %v810
        %v813 = vsub.s32 4, %v789
        %v814 = vsel %vm729, %v813, %v789
        %v815 = vsel %vm728, %v623, %v812
        %v816 = vsel %vm728, 0, %v814
        %v817 = vcosq.f32.pop %v815
        %v818 = vsinq.f32.pop %v815
        %vm819 = vweird.f32 %v623
        %v820 = vand.u32 %v816, 3
        %vm821 = vcmp.lt.s32.totalorder %v820, 2
        %vm822 = vcmp.eq.s32.totalorder %v820, 0
        %v823 = vxor.u32 %v818, 2147483648
        %v824 = vsel %vm822, %v817, %v823
        %vm825 = vcmp.eq.s32.totalorder %v820, 2
        %v826 = vxor.u32 %v817, 2147483648
        %v827 = vsel %vm825, %v826, %v818
        %v828 = vsel %vm821, %v824, %v827
        %v829 = vsel %vm819, nan, %v828
        %v830 = vadd.f32 %v726, 1.0
        %v831 = vadd.f32 %v829, 1.0
        %v832 = vmul.f32 %v830, 0.5
        %v833 = vmul.f32 %v831, 0.5
        %vm834 = vcmp.le.f32.partialorder %v574, %v619
        %vm835 = vcmp.le.f32.partialorder %v579, %v619
        %v836 = vsel %vm834, %v832, 0.0
        %v837 = vsel %vm835, %v833, 0.0
        %v838 = vmul.f32 %v600, %v836
        %v839 = vmul.f32 %v602, %v837
        %841 = vset.pattern.permute.xlu0 0
        %842 = vperm.xlu0 %841, %v568
        %v843 = vpop.permute.xlu0 %842
        %846 = vset.pattern.permute.xlu0 0
        %847 = vperm.xlu0 %846, %v569
        %v848 = vpop.permute.xlu0 %847
        %v851 = vlaneseq
        %v852 = vshrl.u32 %v851, 7
        %v853 = vsub.s32 0, %v852
        %v854 = vrot.slane %v562, %v853
        %vm856 = vcmp.eq.f32.partialorder %v843, %v854
        %vm857 = vcmp.eq.f32.partialorder %v848, %v854
        %v858 = vsel %vm856, 1, 0
        %v859 = vsel %vm857, 1, 0
        %v860 = vcvt.s32.f32 %v858
        %v861 = vcvt.s32.f32 %v859
        %v862 = vmul.f32 %v860, %v838
        %v863 = vmul.f32 %v861, %v839
        %s864 = scalar_lea.vmem %s514, 16 [#allocation4]
        %v865 = vld [vmem:[%s864] sm:$0xff]
        %v866 = vld [vmem:[%s864 + $0x8] sm:$0xff]
        %s867 = scalar_lea.vmem %s507, 16 [#allocation3]
        %v868 = vld [vmem:[%s867] sm:$0xff]
        %v869 = vld [vmem:[%s867 + $0x8] sm:$0xff]
        %871 = vset.pattern.permute.xlu0 0
        %872 = vperm.xlu0 %871, %v865
        %v873 = vpop.permute.xlu0 %872
        %876 = vset.pattern.permute.xlu0 0
        %877 = vperm.xlu0 %876, %v866
        %v878 = vpop.permute.xlu0 %877
        %v880 = vsub.f32 %v873, %v585
        %v881 = vsub.f32 %v878, %v585
        %v882 = vmul.f32 %v880, %v880
        %v883 = vmul.f32 %v881, %v881
        %v884 = vmul.f32 %v595, %v882
        %v885 = vmul.f32 %v595, %v883
        %v886 = vmul.f32 %v884, 1.442695
        %v887 = vpow.pop %v886
        %v888 = vmul.f32 %v885, 1.442695
        %v889 = vpow.pop %v888
        %v890 = vmul.f32 %v865, 3.1415927
        %v891 = vmul.f32 %v866, 3.1415927
        %893 = vset.pattern.permute.xlu0 0
        %894 = vperm.xlu0 %893, %v890
        %v895 = vpop.permute.xlu0 %894
        %898 = vset.pattern.permute.xlu0 0
        %899 = vperm.xlu0 %898, %v891
        %v900 = vpop.permute.xlu0 %899
        %v902 = vmul.f32 %v895, %v621
        %v903 = vmul.f32 %v900, %v621
        %v904 = vand.u32 2147483647, %v902
        %vm905 = vcmp.le.f32.partialorder %v904, 0.7853982
        %vm906 = vcmp.lt.s32.totalorder %v902, 0
        %v907 = vand.u32 %v902, 2139095040
        %v908 = vshrl.u32 %v907, 23
        %v909 = vsub.s32 %v908, 127
        %v910 = vand.u32 2147483647, %v902
        %v911 = vand.u32 %v910, 8388607
        %v912 = vor.u32 %v911, 8388608
        %v913 = vsub.s32 0, %v912
        %v914 = vadd.s32 %v909, 1
        %vm915 = vcmp.gt.s32.totalorder %v914, 0
        %v916 = vsel %vm915, %v914, 0
        %v917 = vshrl.u32 %v916, 5
        %v918 = vand.u32 %v916, 31
        %v919 = vsub.s32 32, %v918
        %v920 = vshrl.u32 683565275, %v919
        %v921 = vshll.u32 683565275, %v918
        %v922 = vshrl.u32 2475754826, %v919
        %v923 = vor.u32 %v921, %v922
        %v924 = vshll.u32 2475754826, %v918
        %v925 = vshrl.u32 2131351028, %v919
        %v926 = vor.u32 %v924, %v925
        %v927 = vshll.u32 2131351028, %v918
        %v928 = vshrl.u32 2102212464, %v919
        %v929 = vor.u32 %v927, %v928
        %v930 = vshll.u32 2102212464, %v918
        %v931 = vshrl.u32 920167782, %v919
        %v932 = vor.u32 %v930, %v931
        %v933 = vshll.u32 920167782, %v918
        %v934 = vshrl.u32 1326507024, %v919
        %v935 = vor.u32 %v933, %v934
        %vm936 = vcmp.lt.s32.totalorder %v917, 1
        %vm937 = vcmp.lt.s32.totalorder %v917, 2
        %vm938 = vcmp.lt.s32.totalorder %v917, 3
        %vm939 = vcmp.lt.s32.totalorder %v917, 4
        %v940 = vsel %vm936, %v920, %v923
        %v941 = vsel %vm939, %v929, 2102212464
        %v942 = vsel %vm938, %v926, %v941
        %v943 = vsel %vm937, %v940, %v942
        %v944 = vsel %vm936, %v923, %v926
        %v945 = vsel %vm939, %v932, 920167782
        %v946 = vsel %vm938, %v929, %v945
        %v947 = vsel %vm937, %v944, %v946
        %v948 = vsel %vm936, %v926, %v929
        %v949 = vsel %vm939, %v935, 1326507024
        %v950 = vsel %vm938, %v932, %v949
        %v951 = vsel %vm937, %v948, %v950
        %v952 = vshll.u32 %v912, 8
        %v953 = vmul.u32.u64.compose %v952, %v951
        %v954 = vextract.low.u32 %v953
        %v955 = vextract.high.u32 %v953
        %v956 = vmul.u32.u64.compose %v952, %v947
        %v957 = vextract.low.u32 %v956
        %v958 = vextract.high.u32 %v956
        %v959 = vmul.u32 %v952, %v943
        %v960 = vadd.s32 %v955, %v957
        %vm961 = vc.u32 %v955, %v957
        %v962 = vadd.s32 %v958, 1
        %v963 = vsel %vm961, %v962, %v958
        %v964 = vadd.s32 %v959, %v963
        %v965 = vadd.s32 %v964, 536870912
        %v966 = vshrl.u32 %v965, 30
        %v967 = vshll.u32 %v966, 30
        %v968 = vsub.s32 %v964, %v967
        %vm969 = vcmp.lt.s32.totalorder %v968, 0
        %v970 = vsub.s32 0, %v968
        %v971 = vsel %vm969, %v970, %v968
        %v972 = vclz %v971
        %v973 = vsub.s32 %v972, 2
        %vm974 = vcmp.gt.s32.totalorder 0, %v973
        %v975 = vsel %vm974, 0, %v973
        %v976 = vsub.s32 32, %v975
        %v977 = vshll.u32 %v968, %v975
        %v978 = vshrl.u32 %v960, %v976
        %v979 = vor.u32 %v977, %v978
        %v980 = vsub.s32 4294967266, %v975
        %v981 = vadd.s32 %v980, 127
        %v982 = vshll.u32 %v981, 23
        %v983 = vor.u32 4788187, %v982
        %v984 = vand.u32 2147483647, %v983
        %v986 = vcvt.s32.f32 %v979
        %v987 = vmul.f32 %v986, %v984
        %v988 = vxor.u32 %v987, 2147483648
        %v989 = vsel %vm906, %v988, %v987
        %v990 = vsub.s32 4, %v966
        %v991 = vsel %vm906, %v990, %v966
        %v992 = vsel %vm905, %v902, %v989
        %v993 = vsel %vm905, 0, %v991
        %v994 = vcosq.f32.pop %v992
        %v995 = vsinq.f32.pop %v992
        %vm996 = vweird.f32 %v902
        %v997 = vand.u32 %v993, 3
        %vm998 = vcmp.lt.s32.totalorder %v997, 2
        %vm999 = vcmp.eq.s32.totalorder %v997, 0
        %v1000 = vxor.u32 %v995, 2147483648
        %v1001 = vsel %vm999, %v994, %v1000
        %vm1002 = vcmp.eq.s32.totalorder %v997, 2
        %v1003 = vxor.u32 %v994, 2147483648
        %v1004 = vsel %vm1002, %v1003, %v995
        %v1005 = vsel %vm998, %v1001, %v1004
        %v1006 = vsel %vm996, nan, %v1005
        %v1007 = vand.u32 2147483647, %v903
        %vm1008 = vcmp.le.f32.partialorder %v1007, 0.7853982
        %vm1009 = vcmp.lt.s32.totalorder %v903, 0
        %v1010 = vand.u32 %v903, 2139095040
        %v1011 = vshrl.u32 %v1010, 23
        %v1012 = vsub.s32 %v1011, 127
        %v1013 = vand.u32 2147483647, %v903
        %v1014 = vand.u32 %v1013, 8388607
        %v1015 = vor.u32 %v1014, 8388608
        %v1016 = vsub.s32 0, %v1015
        %v1017 = vadd.s32 %v1012, 1
        %vm1018 = vcmp.gt.s32.totalorder %v1017, 0
        %v1019 = vsel %vm1018, %v1017, 0
        %v1020 = vshrl.u32 %v1019, 5
        %v1021 = vand.u32 %v1019, 31
        %v1022 = vsub.s32 32, %v1021
        %v1023 = vshrl.u32 683565275, %v1022
        %v1024 = vshll.u32 683565275, %v1021
        %v1025 = vshrl.u32 2475754826, %v1022
        %v1026 = vor.u32 %v1024, %v1025
        %v1027 = vshll.u32 2475754826, %v1021
        %v1028 = vshrl.u32 2131351028, %v1022
        %v1029 = vor.u32 %v1027, %v1028
        %v1030 = vshll.u32 2131351028, %v1021
        %v1031 = vshrl.u32 2102212464, %v1022
        %v1032 = vor.u32 %v1030, %v1031
        %v1033 = vshll.u32 2102212464, %v1021
        %v1034 = vshrl.u32 920167782, %v1022
        %v1035 = vor.u32 %v1033, %v1034
        %v1036 = vshll.u32 920167782, %v1021
        %v1037 = vshrl.u32 1326507024, %v1022
        %v1038 = vor.u32 %v1036, %v1037
        %vm1039 = vcmp.lt.s32.totalorder %v1020, 1
        %vm1040 = vcmp.lt.s32.totalorder %v1020, 2
        %vm1041 = vcmp.lt.s32.totalorder %v1020, 3
        %vm1042 = vcmp.lt.s32.totalorder %v1020, 4
        %v1043 = vsel %vm1039, %v1023, %v1026
        %v1044 = vsel %vm1042, %v1032, 2102212464
        %v1045 = vsel %vm1041, %v1029, %v1044
        %v1046 = vsel %vm1040, %v1043, %v1045
        %v1047 = vsel %vm1039, %v1026, %v1029
        %v1048 = vsel %vm1042, %v1035, 920167782
        %v1049 = vsel %vm1041, %v1032, %v1048
        %v1050 = vsel %vm1040, %v1047, %v1049
        %v1051 = vsel %vm1039, %v1029, %v1032
        %v1052 = vsel %vm1042, %v1038, 1326507024
        %v1053 = vsel %vm1041, %v1035, %v1052
        %v1054 = vsel %vm1040, %v1051, %v1053
        %v1055 = vshll.u32 %v1015, 8
        %v1056 = vmul.u32.u64.compose %v1055, %v1054
        %v1057 = vextract.low.u32 %v1056
        %v1058 = vextract.high.u32 %v1056
        %v1059 = vmul.u32.u64.compose %v1055, %v1050
        %v1060 = vextract.low.u32 %v1059
        %v1061 = vextract.high.u32 %v1059
        %v1062 = vmul.u32 %v1055, %v1046
        %v1063 = vadd.s32 %v1058, %v1060
        %vm1064 = vc.u32 %v1058, %v1060
        %v1065 = vadd.s32 %v1061, 1
        %v1066 = vsel %vm1064, %v1065, %v1061
        %v1067 = vadd.s32 %v1062, %v1066
        %v1068 = vadd.s32 %v1067, 536870912
        %v1069 = vshrl.u32 %v1068, 30
        %v1070 = vshll.u32 %v1069, 30
        %v1071 = vsub.s32 %v1067, %v1070
        %vm1072 = vcmp.lt.s32.totalorder %v1071, 0
        %v1073 = vsub.s32 0, %v1071
        %v1074 = vsel %vm1072, %v1073, %v1071
        %v1075 = vclz %v1074
        %v1076 = vsub.s32 %v1075, 2
        %vm1077 = vcmp.gt.s32.totalorder 0, %v1076
        %v1078 = vsel %vm1077, 0, %v1076
        %v1079 = vsub.s32 32, %v1078
        %v1080 = vshll.u32 %v1071, %v1078
        %v1081 = vshrl.u32 %v1063, %v1079
        %v1082 = vor.u32 %v1080, %v1081
        %v1083 = vsub.s32 4294967266, %v1078
        %v1084 = vadd.s32 %v1083, 127
        %v1085 = vshll.u32 %v1084, 23
        %v1086 = vor.u32 4788187, %v1085
        %v1087 = vand.u32 2147483647, %v1086
        %v1089 = vcvt.s32.f32 %v1082
        %v1090 = vmul.f32 %v1089, %v1087
        %v1091 = vxor.u32 %v1090, 2147483648
        %v1092 = vsel %vm1009, %v1091, %v1090
        %v1093 = vsub.s32 4, %v1069
        %v1094 = vsel %vm1009, %v1093, %v1069
        %v1095 = vsel %vm1008, %v903, %v1092
        %v1096 = vsel %vm1008, 0, %v1094
        %v1097 = vcosq.f32.pop %v1095
        %v1098 = vsinq.f32.pop %v1095
        %vm1099 = vweird.f32 %v903
        %v1100 = vand.u32 %v1096, 3
        %vm1101 = vcmp.lt.s32.totalorder %v1100, 2
        %vm1102 = vcmp.eq.s32.totalorder %v1100, 0
        %v1103 = vxor.u32 %v1098, 2147483648
        %v1104 = vsel %vm1102, %v1097, %v1103
        %vm1105 = vcmp.eq.s32.totalorder %v1100, 2
        %v1106 = vxor.u32 %v1097, 2147483648
        %v1107 = vsel %vm1105, %v1106, %v1098
        %v1108 = vsel %vm1101, %v1104, %v1107
        %v1109 = vsel %vm1099, nan, %v1108
        %v1110 = vadd.f32 %v1006, 1.0
        %v1111 = vadd.f32 %v1109, 1.0
        %v1112 = vmul.f32 %v1110, 0.5
        %v1113 = vmul.f32 %v1111, 0.5
        %vm1114 = vcmp.le.f32.partialorder %v873, %v619
        %vm1115 = vcmp.le.f32.partialorder %v878, %v619
        %v1116 = vsel %vm1114, %v1112, 0.0
        %v1117 = vsel %vm1115, %v1113, 0.0
        %v1118 = vmul.f32 %v887, %v1116
        %v1119 = vmul.f32 %v889, %v1117
        %1121 = vset.pattern.permute.xlu0 0
        %1122 = vperm.xlu0 %1121, %v868
        %v1123 = vpop.permute.xlu0 %1122
        %1126 = vset.pattern.permute.xlu0 0
        %1127 = vperm.xlu0 %1126, %v869
        %v1128 = vpop.permute.xlu0 %1127
        %vm1130 = vcmp.eq.f32.partialorder %v1123, %v854
        %vm1131 = vcmp.eq.f32.partialorder %v1128, %v854
        %v1132 = vsel %vm1130, 1, 0
        %v1133 = vsel %vm1131, 1, 0
        %v1134 = vcvt.s32.f32 %v1132
        %v1135 = vcvt.s32.f32 %v1133
        %v1136 = vmul.f32 %v1134, %v1118
        %v1137 = vmul.f32 %v1135, %v1119
        %v1138 = vadd.f32 %v862, %v1136
        %v1139 = vadd.f32 %v863, %v1137
        %s1140 = scalar_lea.vmem %s514, 32 [#allocation4]
        %v1141 = vld [vmem:[%s1140] sm:$0xff]
        %v1142 = vld [vmem:[%s1140 + $0x8] sm:$0xff]
        %s1143 = scalar_lea.vmem %s507, 32 [#allocation3]
        %v1144 = vld [vmem:[%s1143] sm:$0xff]
        %v1145 = vld [vmem:[%s1143 + $0x8] sm:$0xff]
        %1147 = vset.pattern.permute.xlu0 0
        %1148 = vperm.xlu0 %1147, %v1141
        %v1149 = vpop.permute.xlu0 %1148
        %1152 = vset.pattern.permute.xlu0 0
        %1153 = vperm.xlu0 %1152, %v1142
        %v1154 = vpop.permute.xlu0 %1153
        %v1156 = vsub.f32 %v1149, %v585
        %v1157 = vsub.f32 %v1154, %v585
        %v1158 = vmul.f32 %v1156, %v1156
        %v1159 = vmul.f32 %v1157, %v1157
        %v1160 = vmul.f32 %v595, %v1158
        %v1161 = vmul.f32 %v595, %v1159
        %v1162 = vmul.f32 %v1160, 1.442695
        %v1163 = vpow.pop %v1162
        %v1164 = vmul.f32 %v1161, 1.442695
        %v1165 = vpow.pop %v1164
        %v1166 = vmul.f32 %v1141, 3.1415927
        %v1167 = vmul.f32 %v1142, 3.1415927
        %1169 = vset.pattern.permute.xlu0 0
        %1170 = vperm.xlu0 %1169, %v1166
        %v1171 = vpop.permute.xlu0 %1170
        %1174 = vset.pattern.permute.xlu0 0
        %1175 = vperm.xlu0 %1174, %v1167
        %v1176 = vpop.permute.xlu0 %1175
        %v1178 = vmul.f32 %v1171, %v621
        %v1179 = vmul.f32 %v1176, %v621
        %v1180 = vand.u32 2147483647, %v1178
        %vm1181 = vcmp.le.f32.partialorder %v1180, 0.7853982
        %vm1182 = vcmp.lt.s32.totalorder %v1178, 0
        %v1183 = vand.u32 %v1178, 2139095040
        %v1184 = vshrl.u32 %v1183, 23
        %v1185 = vsub.s32 %v1184, 127
        %v1186 = vand.u32 2147483647, %v1178
        %v1187 = vand.u32 %v1186, 8388607
        %v1188 = vor.u32 %v1187, 8388608
        %v1189 = vsub.s32 0, %v1188
        %v1190 = vadd.s32 %v1185, 1
        %vm1191 = vcmp.gt.s32.totalorder %v1190, 0
        %v1192 = vsel %vm1191, %v1190, 0
        %v1193 = vshrl.u32 %v1192, 5
        %v1194 = vand.u32 %v1192, 31
        %v1195 = vsub.s32 32, %v1194
        %v1196 = vshrl.u32 683565275, %v1195
        %v1197 = vshll.u32 683565275, %v1194
        %v1198 = vshrl.u32 2475754826, %v1195
        %v1199 = vor.u32 %v1197, %v1198
        %v1200 = vshll.u32 2475754826, %v1194
        %v1201 = vshrl.u32 2131351028, %v1195
        %v1202 = vor.u32 %v1200, %v1201
        %v1203 = vshll.u32 2131351028, %v1194
        %v1204 = vshrl.u32 2102212464, %v1195
        %v1205 = vor.u32 %v1203, %v1204
        %v1206 = vshll.u32 2102212464, %v1194
        %v1207 = vshrl.u32 920167782, %v1195
        %v1208 = vor.u32 %v1206, %v1207
        %v1209 = vshll.u32 920167782, %v1194
        %v1210 = vshrl.u32 1326507024, %v1195
        %v1211 = vor.u32 %v1209, %v1210
        %vm1212 = vcmp.lt.s32.totalorder %v1193, 1
        %vm1213 = vcmp.lt.s32.totalorder %v1193, 2
        %vm1214 = vcmp.lt.s32.totalorder %v1193, 3
        %vm1215 = vcmp.lt.s32.totalorder %v1193, 4
        %v1216 = vsel %vm1212, %v1196, %v1199
        %v1217 = vsel %vm1215, %v1205, 2102212464
        %v1218 = vsel %vm1214, %v1202, %v1217
        %v1219 = vsel %vm1213, %v1216, %v1218
        %v1220 = vsel %vm1212, %v1199, %v1202
        %v1221 = vsel %vm1215, %v1208, 920167782
        %v1222 = vsel %vm1214, %v1205, %v1221
        %v1223 = vsel %vm1213, %v1220, %v1222
        %v1224 = vsel %vm1212, %v1202, %v1205
        %v1225 = vsel %vm1215, %v1211, 1326507024
        %v1226 = vsel %vm1214, %v1208, %v1225
        %v1227 = vsel %vm1213, %v1224, %v1226
        %v1228 = vshll.u32 %v1188, 8
        %v1229 = vmul.u32.u64.compose %v1228, %v1227
        %v1230 = vextract.low.u32 %v1229
        %v1231 = vextract.high.u32 %v1229
        %v1232 = vmul.u32.u64.compose %v1228, %v1223
        %v1233 = vextract.low.u32 %v1232
        %v1234 = vextract.high.u32 %v1232
        %v1235 = vmul.u32 %v1228, %v1219
        %v1236 = vadd.s32 %v1231, %v1233
        %vm1237 = vc.u32 %v1231, %v1233
        %v1238 = vadd.s32 %v1234, 1
        %v1239 = vsel %vm1237, %v1238, %v1234
        %v1240 = vadd.s32 %v1235, %v1239
        %v1241 = vadd.s32 %v1240, 536870912
        %v1242 = vshrl.u32 %v1241, 30
        %v1243 = vshll.u32 %v1242, 30
        %v1244 = vsub.s32 %v1240, %v1243
        %vm1245 = vcmp.lt.s32.totalorder %v1244, 0
        %v1246 = vsub.s32 0, %v1244
        %v1247 = vsel %vm1245, %v1246, %v1244
        %v1248 = vclz %v1247
        %v1249 = vsub.s32 %v1248, 2
        %vm1250 = vcmp.gt.s32.totalorder 0, %v1249
        %v1251 = vsel %vm1250, 0, %v1249
        %v1252 = vsub.s32 32, %v1251
        %v1253 = vshll.u32 %v1244, %v1251
        %v1254 = vshrl.u32 %v1236, %v1252
        %v1255 = vor.u32 %v1253, %v1254
        %v1256 = vsub.s32 4294967266, %v1251
        %v1257 = vadd.s32 %v1256, 127
        %v1258 = vshll.u32 %v1257, 23
        %v1259 = vor.u32 4788187, %v1258
        %v1260 = vand.u32 2147483647, %v1259
        %v1262 = vcvt.s32.f32 %v1255
        %v1263 = vmul.f32 %v1262, %v1260
        %v1264 = vxor.u32 %v1263, 2147483648
        %v1265 = vsel %vm1182, %v1264, %v1263
        %v1266 = vsub.s32 4, %v1242
        %v1267 = vsel %vm1182, %v1266, %v1242
        %v1268 = vsel %vm1181, %v1178, %v1265
        %v1269 = vsel %vm1181, 0, %v1267
        %v1270 = vcosq.f32.pop %v1268
        %v1271 = vsinq.f32.pop %v1268
        %vm1272 = vweird.f32 %v1178
        %v1273 = vand.u32 %v1269, 3
        %vm1274 = vcmp.lt.s32.totalorder %v1273, 2
        %vm1275 = vcmp.eq.s32.totalorder %v1273, 0
        %v1276 = vxor.u32 %v1271, 2147483648
        %v1277 = vsel %vm1275, %v1270, %v1276
        %vm1278 = vcmp.eq.s32.totalorder %v1273, 2
        %v1279 = vxor.u32 %v1270, 2147483648
        %v1280 = vsel %vm1278, %v1279, %v1271
        %v1281 = vsel %vm1274, %v1277, %v1280
        %v1282 = vsel %vm1272, nan, %v1281
        %v1283 = vand.u32 2147483647, %v1179
        %vm1284 = vcmp.le.f32.partialorder %v1283, 0.7853982
        %vm1285 = vcmp.lt.s32.totalorder %v1179, 0
        %v1286 = vand.u32 %v1179, 2139095040
        %v1287 = vshrl.u32 %v1286, 23
        %v1288 = vsub.s32 %v1287, 127
        %v1289 = vand.u32 2147483647, %v1179
        %v1290 = vand.u32 %v1289, 8388607
        %v1291 = vor.u32 %v1290, 8388608
        %v1292 = vsub.s32 0, %v1291
        %v1293 = vadd.s32 %v1288, 1
        %vm1294 = vcmp.gt.s32.totalorder %v1293, 0
        %v1295 = vsel %vm1294, %v1293, 0
        %v1296 = vshrl.u32 %v1295, 5
        %v1297 = vand.u32 %v1295, 31
        %v1298 = vsub.s32 32, %v1297
        %v1299 = vshrl.u32 683565275, %v1298
        %v1300 = vshll.u32 683565275, %v1297
        %v1301 = vshrl.u32 2475754826, %v1298
        %v1302 = vor.u32 %v1300, %v1301
        %v1303 = vshll.u32 2475754826, %v1297
        %v1304 = vshrl.u32 2131351028, %v1298
        %v1305 = vor.u32 %v1303, %v1304
        %v1306 = vshll.u32 2131351028, %v1297
        %v1307 = vshrl.u32 2102212464, %v1298
        %v1308 = vor.u32 %v1306, %v1307
        %v1309 = vshll.u32 2102212464, %v1297
        %v1310 = vshrl.u32 920167782, %v1298
        %v1311 = vor.u32 %v1309, %v1310
        %v1312 = vshll.u32 920167782, %v1297
        %v1313 = vshrl.u32 1326507024, %v1298
        %v1314 = vor.u32 %v1312, %v1313
        %vm1315 = vcmp.lt.s32.totalorder %v1296, 1
        %vm1316 = vcmp.lt.s32.totalorder %v1296, 2
        %vm1317 = vcmp.lt.s32.totalorder %v1296, 3
        %vm1318 = vcmp.lt.s32.totalorder %v1296, 4
        %v1319 = vsel %vm1315, %v1299, %v1302
        %v1320 = vsel %vm1318, %v1308, 2102212464
        %v1321 = vsel %vm1317, %v1305, %v1320
        %v1322 = vsel %vm1316, %v1319, %v1321
        %v1323 = vsel %vm1315, %v1302, %v1305
        %v1324 = vsel %vm1318, %v1311, 920167782
        %v1325 = vsel %vm1317, %v1308, %v1324
        %v1326 = vsel %vm1316, %v1323, %v1325
        %v1327 = vsel %vm1315, %v1305, %v1308
        %v1328 = vsel %vm1318, %v1314, 1326507024
        %v1329 = vsel %vm1317, %v1311, %v1328
        %v1330 = vsel %vm1316, %v1327, %v1329
        %v1331 = vshll.u32 %v1291, 8
        %v1332 = vmul.u32.u64.compose %v1331, %v1330
        %v1333 = vextract.low.u32 %v1332
        %v1334 = vextract.high.u32 %v1332
        %v1335 = vmul.u32.u64.compose %v1331, %v1326
        %v1336 = vextract.low.u32 %v1335
        %v1337 = vextract.high.u32 %v1335
        %v1338 = vmul.u32 %v1331, %v1322
        %v1339 = vadd.s32 %v1334, %v1336
        %vm1340 = vc.u32 %v1334, %v1336
        %v1341 = vadd.s32 %v1337, 1
        %v1342 = vsel %vm1340, %v1341, %v1337
        %v1343 = vadd.s32 %v1338, %v1342
        %v1344 = vadd.s32 %v1343, 536870912
        %v1345 = vshrl.u32 %v1344, 30
        %v1346 = vshll.u32 %v1345, 30
        %v1347 = vsub.s32 %v1343, %v1346
        %vm1348 = vcmp.lt.s32.totalorder %v1347, 0
        %v1349 = vsub.s32 0, %v1347
        %v1350 = vsel %vm1348, %v1349, %v1347
        %v1351 = vclz %v1350
        %v1352 = vsub.s32 %v1351, 2
        %vm1353 = vcmp.gt.s32.totalorder 0, %v1352
        %v1354 = vsel %vm1353, 0, %v1352
        %v1355 = vsub.s32 32, %v1354
        %v1356 = vshll.u32 %v1347, %v1354
        %v1357 = vshrl.u32 %v1339, %v1355
        %v1358 = vor.u32 %v1356, %v1357
        %v1359 = vsub.s32 4294967266, %v1354
        %v1360 = vadd.s32 %v1359, 127
        %v1361 = vshll.u32 %v1360, 23
        %v1362 = vor.u32 4788187, %v1361
        %v1363 = vand.u32 2147483647, %v1362
        %v1365 = vcvt.s32.f32 %v1358
        %v1366 = vmul.f32 %v1365, %v1363
        %v1367 = vxor.u32 %v1366, 2147483648
        %v1368 = vsel %vm1285, %v1367, %v1366
        %v1369 = vsub.s32 4, %v1345
        %v1370 = vsel %vm1285, %v1369, %v1345
        %v1371 = vsel %vm1284, %v1179, %v1368
        %v1372 = vsel %vm1284, 0, %v1370
        %v1373 = vcosq.f32.pop %v1371
        %v1374 = vsinq.f32.pop %v1371
        %vm1375 = vweird.f32 %v1179
        %v1376 = vand.u32 %v1372, 3
        %vm1377 = vcmp.lt.s32.totalorder %v1376, 2
        %vm1378 = vcmp.eq.s32.totalorder %v1376, 0
        %v1379 = vxor.u32 %v1374, 2147483648
        %v1380 = vsel %vm1378, %v1373, %v1379
        %vm1381 = vcmp.eq.s32.totalorder %v1376, 2
        %v1382 = vxor.u32 %v1373, 2147483648
        %v1383 = vsel %vm1381, %v1382, %v1374
        %v1384 = vsel %vm1377, %v1380, %v1383
        %v1385 = vsel %vm1375, nan, %v1384
        %v1386 = vadd.f32 %v1282, 1.0
        %v1387 = vadd.f32 %v1385, 1.0
        %v1388 = vmul.f32 %v1386, 0.5
        %v1389 = vmul.f32 %v1387, 0.5
        %vm1390 = vcmp.le.f32.partialorder %v1149, %v619
        %vm1391 = vcmp.le.f32.partialorder %v1154, %v619
        %v1392 = vsel %vm1390, %v1388, 0.0
        %v1393 = vsel %vm1391, %v1389, 0.0
        %v1394 = vmul.f32 %v1163, %v1392
        %v1395 = vmul.f32 %v1165, %v1393
        %1397 = vset.pattern.permute.xlu0 0
        %1398 = vperm.xlu0 %1397, %v1144
        %v1399 = vpop.permute.xlu0 %1398
        %1402 = vset.pattern.permute.xlu0 0
        %1403 = vperm.xlu0 %1402, %v1145
        %v1404 = vpop.permute.xlu0 %1403
        %vm1406 = vcmp.eq.f32.partialorder %v1399, %v854
        %vm1407 = vcmp.eq.f32.partialorder %v1404, %v854
        %v1408 = vsel %vm1406, 1, 0
        %v1409 = vsel %vm1407, 1, 0
        %v1410 = vcvt.s32.f32 %v1408
        %v1411 = vcvt.s32.f32 %v1409
        %v1412 = vmul.f32 %v1410, %v1394
        %v1413 = vmul.f32 %v1411, %v1395
        %v1414 = vadd.f32 %v1138, %v1412
        %v1415 = vadd.f32 %v1139, %v1413
        %s1416 = scalar_lea.vmem %s514, 48 [#allocation4]
        %v1417 = vld [vmem:[%s1416] sm:$0xff]
        %v1418 = vld [vmem:[%s1416 + $0x8] sm:$0xff]
        %s1419 = scalar_lea.vmem %s507, 48 [#allocation3]
        %v1420 = vld [vmem:[%s1419] sm:$0xff]
        %v1421 = vld [vmem:[%s1419 + $0x8] sm:$0xff]
        %1423 = vset.pattern.permute.xlu0 0
        %1424 = vperm.xlu0 %1423, %v1417
        %v1425 = vpop.permute.xlu0 %1424
        %1428 = vset.pattern.permute.xlu0 0
        %1429 = vperm.xlu0 %1428, %v1418
        %v1430 = vpop.permute.xlu0 %1429
        %v1432 = vsub.f32 %v1425, %v585
        %v1433 = vsub.f32 %v1430, %v585
        %v1434 = vmul.f32 %v1432, %v1432
        %v1435 = vmul.f32 %v1433, %v1433
        %v1436 = vmul.f32 %v595, %v1434
        %v1437 = vmul.f32 %v595, %v1435
        %v1438 = vmul.f32 %v1436, 1.442695
        %v1439 = vpow.pop %v1438
        %v1440 = vmul.f32 %v1437, 1.442695
        %v1441 = vpow.pop %v1440
        %v1442 = vmul.f32 %v1417, 3.1415927
        %v1443 = vmul.f32 %v1418, 3.1415927
        %1445 = vset.pattern.permute.xlu0 0
        %1446 = vperm.xlu0 %1445, %v1442
        %v1447 = vpop.permute.xlu0 %1446
        %1450 = vset.pattern.permute.xlu0 0
        %1451 = vperm.xlu0 %1450, %v1443
        %v1452 = vpop.permute.xlu0 %1451
        %v1454 = vmul.f32 %v1447, %v621
        %v1455 = vmul.f32 %v1452, %v621
        %v1456 = vand.u32 2147483647, %v1454
        %vm1457 = vcmp.le.f32.partialorder %v1456, 0.7853982
        %vm1458 = vcmp.lt.s32.totalorder %v1454, 0
        %v1459 = vand.u32 %v1454, 2139095040
        %v1460 = vshrl.u32 %v1459, 23
        %v1461 = vsub.s32 %v1460, 127
        %v1462 = vand.u32 2147483647, %v1454
        %v1463 = vand.u32 %v1462, 8388607
        %v1464 = vor.u32 %v1463, 8388608
        %v1465 = vsub.s32 0, %v1464
        %v1466 = vadd.s32 %v1461, 1
        %vm1467 = vcmp.gt.s32.totalorder %v1466, 0
        %v1468 = vsel %vm1467, %v1466, 0
        %v1469 = vshrl.u32 %v1468, 5
        %v1470 = vand.u32 %v1468, 31
        %v1471 = vsub.s32 32, %v1470
        %v1472 = vshrl.u32 683565275, %v1471
        %v1473 = vshll.u32 683565275, %v1470
        %v1474 = vshrl.u32 2475754826, %v1471
        %v1475 = vor.u32 %v1473, %v1474
        %v1476 = vshll.u32 2475754826, %v1470
        %v1477 = vshrl.u32 2131351028, %v1471
        %v1478 = vor.u32 %v1476, %v1477
        %v1479 = vshll.u32 2131351028, %v1470
        %v1480 = vshrl.u32 2102212464, %v1471
        %v1481 = vor.u32 %v1479, %v1480
        %v1482 = vshll.u32 2102212464, %v1470
        %v1483 = vshrl.u32 920167782, %v1471
        %v1484 = vor.u32 %v1482, %v1483
        %v1485 = vshll.u32 920167782, %v1470
        %v1486 = vshrl.u32 1326507024, %v1471
        %v1487 = vor.u32 %v1485, %v1486
        %vm1488 = vcmp.lt.s32.totalorder %v1469, 1
        %vm1489 = vcmp.lt.s32.totalorder %v1469, 2
        %vm1490 = vcmp.lt.s32.totalorder %v1469, 3
        %vm1491 = vcmp.lt.s32.totalorder %v1469, 4
        %v1492 = vsel %vm1488, %v1472, %v1475
        %v1493 = vsel %vm1491, %v1481, 2102212464
        %v1494 = vsel %vm1490, %v1478, %v1493
        %v1495 = vsel %vm1489, %v1492, %v1494
        %v1496 = vsel %vm1488, %v1475, %v1478
        %v1497 = vsel %vm1491, %v1484, 920167782
        %v1498 = vsel %vm1490, %v1481, %v1497
        %v1499 = vsel %vm1489, %v1496, %v1498
        %v1500 = vsel %vm1488, %v1478, %v1481
        %v1501 = vsel %vm1491, %v1487, 1326507024
        %v1502 = vsel %vm1490, %v1484, %v1501
        %v1503 = vsel %vm1489, %v1500, %v1502
        %v1504 = vshll.u32 %v1464, 8
        %v1505 = vmul.u32.u64.compose %v1504, %v1503
        %v1506 = vextract.low.u32 %v1505
        %v1507 = vextract.high.u32 %v1505
        %v1508 = vmul.u32.u64.compose %v1504, %v1499
        %v1509 = vextract.low.u32 %v1508
        %v1510 = vextract.high.u32 %v1508
        %v1511 = vmul.u32 %v1504, %v1495
        %v1512 = vadd.s32 %v1507, %v1509
        %vm1513 = vc.u32 %v1507, %v1509
        %v1514 = vadd.s32 %v1510, 1
        %v1515 = vsel %vm1513, %v1514, %v1510
        %v1516 = vadd.s32 %v1511, %v1515
        %v1517 = vadd.s32 %v1516, 536870912
        %v1518 = vshrl.u32 %v1517, 30
        %v1519 = vshll.u32 %v1518, 30
        %v1520 = vsub.s32 %v1516, %v1519
        %vm1521 = vcmp.lt.s32.totalorder %v1520, 0
        %v1522 = vsub.s32 0, %v1520
        %v1523 = vsel %vm1521, %v1522, %v1520
        %v1524 = vclz %v1523
        %v1525 = vsub.s32 %v1524, 2
        %vm1526 = vcmp.gt.s32.totalorder 0, %v1525
        %v1527 = vsel %vm1526, 0, %v1525
        %v1528 = vsub.s32 32, %v1527
        %v1529 = vshll.u32 %v1520, %v1527
        %v1530 = vshrl.u32 %v1512, %v1528
        %v1531 = vor.u32 %v1529, %v1530
        %v1532 = vsub.s32 4294967266, %v1527
        %v1533 = vadd.s32 %v1532, 127
        %v1534 = vshll.u32 %v1533, 23
        %v1535 = vor.u32 4788187, %v1534
        %v1536 = vand.u32 2147483647, %v1535
        %v1538 = vcvt.s32.f32 %v1531
        %v1539 = vmul.f32 %v1538, %v1536
        %v1540 = vxor.u32 %v1539, 2147483648
        %v1541 = vsel %vm1458, %v1540, %v1539
        %v1542 = vsub.s32 4, %v1518
        %v1543 = vsel %vm1458, %v1542, %v1518
        %v1544 = vsel %vm1457, %v1454, %v1541
        %v1545 = vsel %vm1457, 0, %v1543
        %v1546 = vcosq.f32.pop %v1544
        %v1547 = vsinq.f32.pop %v1544
        %vm1548 = vweird.f32 %v1454
        %v1549 = vand.u32 %v1545, 3
        %vm1550 = vcmp.lt.s32.totalorder %v1549, 2
        %vm1551 = vcmp.eq.s32.totalorder %v1549, 0
        %v1552 = vxor.u32 %v1547, 2147483648
        %v1553 = vsel %vm1551, %v1546, %v1552
        %vm1554 = vcmp.eq.s32.totalorder %v1549, 2
        %v1555 = vxor.u32 %v1546, 2147483648
        %v1556 = vsel %vm1554, %v1555, %v1547
        %v1557 = vsel %vm1550, %v1553, %v1556
        %v1558 = vsel %vm1548, nan, %v1557
        %v1559 = vand.u32 2147483647, %v1455
        %vm1560 = vcmp.le.f32.partialorder %v1559, 0.7853982
        %vm1561 = vcmp.lt.s32.totalorder %v1455, 0
        %v1562 = vand.u32 %v1455, 2139095040
        %v1563 = vshrl.u32 %v1562, 23
        %v1564 = vsub.s32 %v1563, 127
        %v1565 = vand.u32 2147483647, %v1455
        %v1566 = vand.u32 %v1565, 8388607
        %v1567 = vor.u32 %v1566, 8388608
        %v1568 = vsub.s32 0, %v1567
        %v1569 = vadd.s32 %v1564, 1
        %vm1570 = vcmp.gt.s32.totalorder %v1569, 0
        %v1571 = vsel %vm1570, %v1569, 0
        %v1572 = vshrl.u32 %v1571, 5
        %v1573 = vand.u32 %v1571, 31
        %v1574 = vsub.s32 32, %v1573
        %v1575 = vshrl.u32 683565275, %v1574
        %v1576 = vshll.u32 683565275, %v1573
        %v1577 = vshrl.u32 2475754826, %v1574
        %v1578 = vor.u32 %v1576, %v1577
        %v1579 = vshll.u32 2475754826, %v1573
        %v1580 = vshrl.u32 2131351028, %v1574
        %v1581 = vor.u32 %v1579, %v1580
        %v1582 = vshll.u32 2131351028, %v1573
        %v1583 = vshrl.u32 2102212464, %v1574
        %v1584 = vor.u32 %v1582, %v1583
        %v1585 = vshll.u32 2102212464, %v1573
        %v1586 = vshrl.u32 920167782, %v1574
        %v1587 = vor.u32 %v1585, %v1586
        %v1588 = vshll.u32 920167782, %v1573
        %v1589 = vshrl.u32 1326507024, %v1574
        %v1590 = vor.u32 %v1588, %v1589
        %vm1591 = vcmp.lt.s32.totalorder %v1572, 1
        %vm1592 = vcmp.lt.s32.totalorder %v1572, 2
        %vm1593 = vcmp.lt.s32.totalorder %v1572, 3
        %vm1594 = vcmp.lt.s32.totalorder %v1572, 4
        %v1595 = vsel %vm1591, %v1575, %v1578
        %v1596 = vsel %vm1594, %v1584, 2102212464
        %v1597 = vsel %vm1593, %v1581, %v1596
        %v1598 = vsel %vm1592, %v1595, %v1597
        %v1599 = vsel %vm1591, %v1578, %v1581
        %v1600 = vsel %vm1594, %v1587, 920167782
        %v1601 = vsel %vm1593, %v1584, %v1600
        %v1602 = vsel %vm1592, %v1599, %v1601
        %v1603 = vsel %vm1591, %v1581, %v1584
        %v1604 = vsel %vm1594, %v1590, 1326507024
        %v1605 = vsel %vm1593, %v1587, %v1604
        %v1606 = vsel %vm1592, %v1603, %v1605
        %v1607 = vshll.u32 %v1567, 8
        %v1608 = vmul.u32.u64.compose %v1607, %v1606
        %v1609 = vextract.low.u32 %v1608
        %v1610 = vextract.high.u32 %v1608
        %v1611 = vmul.u32.u64.compose %v1607, %v1602
        %v1612 = vextract.low.u32 %v1611
        %v1613 = vextract.high.u32 %v1611
        %v1614 = vmul.u32 %v1607, %v1598
        %v1615 = vadd.s32 %v1610, %v1612
        %vm1616 = vc.u32 %v1610, %v1612
        %v1617 = vadd.s32 %v1613, 1
        %v1618 = vsel %vm1616, %v1617, %v1613
        %v1619 = vadd.s32 %v1614, %v1618
        %v1620 = vadd.s32 %v1619, 536870912
        %v1621 = vshrl.u32 %v1620, 30
        %v1622 = vshll.u32 %v1621, 30
        %v1623 = vsub.s32 %v1619, %v1622
        %vm1624 = vcmp.lt.s32.totalorder %v1623, 0
        %v1625 = vsub.s32 0, %v1623
        %v1626 = vsel %vm1624, %v1625, %v1623
        %v1627 = vclz %v1626
        %v1628 = vsub.s32 %v1627, 2
        %vm1629 = vcmp.gt.s32.totalorder 0, %v1628
        %v1630 = vsel %vm1629, 0, %v1628
        %v1631 = vsub.s32 32, %v1630
        %v1632 = vshll.u32 %v1623, %v1630
        %v1633 = vshrl.u32 %v1615, %v1631
        %v1634 = vor.u32 %v1632, %v1633
        %v1635 = vsub.s32 4294967266, %v1630
        %v1636 = vadd.s32 %v1635, 127
        %v1637 = vshll.u32 %v1636, 23
        %v1638 = vor.u32 4788187, %v1637
        %v1639 = vand.u32 2147483647, %v1638
        %v1641 = vcvt.s32.f32 %v1634
        %v1642 = vmul.f32 %v1641, %v1639
        %v1643 = vxor.u32 %v1642, 2147483648
        %v1644 = vsel %vm1561, %v1643, %v1642
        %v1645 = vsub.s32 4, %v1621
        %v1646 = vsel %vm1561, %v1645, %v1621
        %v1647 = vsel %vm1560, %v1455, %v1644
        %v1648 = vsel %vm1560, 0, %v1646
        %v1649 = vcosq.f32.pop %v1647
        %v1650 = vsinq.f32.pop %v1647
        %vm1651 = vweird.f32 %v1455
        %v1652 = vand.u32 %v1648, 3
        %vm1653 = vcmp.lt.s32.totalorder %v1652, 2
        %vm1654 = vcmp.eq.s32.totalorder %v1652, 0
        %v1655 = vxor.u32 %v1650, 2147483648
        %v1656 = vsel %vm1654, %v1649, %v1655
        %vm1657 = vcmp.eq.s32.totalorder %v1652, 2
        %v1658 = vxor.u32 %v1649, 2147483648
        %v1659 = vsel %vm1657, %v1658, %v1650
        %v1660 = vsel %vm1653, %v1656, %v1659
        %v1661 = vsel %vm1651, nan, %v1660
        %v1662 = vadd.f32 %v1558, 1.0
        %v1663 = vadd.f32 %v1661, 1.0
        %v1664 = vmul.f32 %v1662, 0.5
        %v1665 = vmul.f32 %v1663, 0.5
        %vm1666 = vcmp.le.f32.partialorder %v1425, %v619
        %vm1667 = vcmp.le.f32.partialorder %v1430, %v619
        %v1668 = vsel %vm1666, %v1664, 0.0
        %v1669 = vsel %vm1667, %v1665, 0.0
        %v1670 = vmul.f32 %v1439, %v1668
        %v1671 = vmul.f32 %v1441, %v1669
        %1673 = vset.pattern.permute.xlu0 0
        %1674 = vperm.xlu0 %1673, %v1420
        %v1675 = vpop.permute.xlu0 %1674
        %1678 = vset.pattern.permute.xlu0 0
        %1679 = vperm.xlu0 %1678, %v1421
        %v1680 = vpop.permute.xlu0 %1679
        %vm1682 = vcmp.eq.f32.partialorder %v1675, %v854
        %vm1683 = vcmp.eq.f32.partialorder %v1680, %v854
        %v1684 = vsel %vm1682, 1, 0
        %v1685 = vsel %vm1683, 1, 0
        %v1686 = vcvt.s32.f32 %v1684
        %v1687 = vcvt.s32.f32 %v1685
        %v1688 = vmul.f32 %v1686, %v1670
        %v1689 = vmul.f32 %v1687, %v1671
        %v1690 = vadd.f32 %v1414, %v1688
        %v1691 = vadd.f32 %v1415, %v1689
        %v1692 = vld [vmem:[%s6] sm:$0xff]
        %v1693 = vld [vmem:[%s6 + $0x8] sm:$0xff]
        %v1694 = vld [vmem:[%s6 + $0x10] sm:$0xf]
        %v1695 = vld [vmem:[%s7] sm:$0x1]
        %v1697 = vlaneseq
        %v1698 = vshrl.u32 %v1697, 7
        %v1699 = vsub.s32 0, %v1698
        %v1700 = vrot.slane %v1695, %v1699
        %vm1702 = vcmask 162816
        %v1704 = vsel %vm1702, %v1690, 0
        %v1707 = vsel %vm1702, %v1691, 0
        %vm1709 = vcmask 1043456
        %v1711 = vsel %vm1709, %v1694, 0
        %1713 = vmatprep.subr.mxu0 0.0
        %1714 = vmatpush1.msra.mxu0 %v1692
        %1715 = vmatprep.subr.mxu0 0.0
        %1716 = vmatpush1.msra.mxu0 %v1693
        %1717 = vmatprep.subr.mxu0 0.0
        %1718 = vmatpush1.msra.mxu0 %v1711
        %1719 = vmatprep.subr.mxu0 0.0
        %1720 = vmatpush1.msra.mxu0 0.0
        %1721 = vmatprep.subr.mxu0 0.0
        %1722 = vmatpush1.msra.mxu0 0.0
        %1723 = vmatprep.subr.mxu0 0.0
        %1724 = vmatpush1.msra.mxu0 0.0
        %1725 = vmatprep.subr.mxu0 0.0
        %1726 = vmatpush1.msra.mxu0 0.0
        %1727 = vmatprep.subr.mxu0 0.0
        %1728 = vmatpush1.msra.mxu0 0.0
        %1729 = vmatprep.subr.mxu0 0.0
        %1730 = vmatpush1.msra.mxu0 0.0
        %1731 = vmatprep.subr.mxu0 0.0
        %1732 = vmatpush1.msra.mxu0 0.0
        %1733 = vmatprep.subr.mxu0 0.0
        %1734 = vmatpush1.msra.mxu0 0.0
        %1735 = vmatprep.subr.mxu0 0.0
        %1736 = vmatpush1.msra.mxu0 0.0
        %1737 = vmatprep.subr.mxu0 0.0
        %1738 = vmatpush1.msra.mxu0 0.0
        %1739 = vmatprep.subr.mxu0 0.0
        %1740 = vmatpush1.msra.mxu0 0.0
        %1741 = vmatprep.subr.mxu0 0.0
        %1742 = vmatpush1.msra.mxu0 0.0
        %1743 = vmatprep.subr.mxu0 0.0
        %1744 = vmatpush1.msra.mxu0 0.0
        %1745 = vmatprep.subr.mxu0 0.0
        %1746 = vmatpush1.msra.mxu0 0.0
        %1747 = vmatprep.subr.mxu0 0.0
        %1748 = vmatpush1.msra.mxu0 0.0
        %1749 = vmatprep.subr.mxu0 0.0
        %1750 = vmatpush1.msra.mxu0 0.0
        %1751 = vmatprep.subr.mxu0 0.0
        %1752 = vmatpush1.msra.mxu0 0.0
        %1753 = vmatprep.subr.mxu0 0.0
        %1754 = vmatpush1.msra.mxu0 0.0
        %1755 = vmatprep.subr.mxu0 0.0
        %1756 = vmatpush1.msra.mxu0 0.0
        %1757 = vmatprep.subr.mxu0 0.0
        %1758 = vmatpush1.msra.mxu0 0.0
        %1759 = vmatprep.subr.mxu0 0.0
        %1760 = vmatpush1.msra.mxu0 0.0
        %1761 = vmatprep.subr.mxu0 0.0
        %1762 = vmatpush1.msra.mxu0 0.0
        %1763 = vmatprep.subr.mxu0 0.0
        %1764 = vmatpush1.msra.mxu0 0.0
        %1765 = vmatprep.subr.mxu0 0.0
        %1766 = vmatpush1.msra.mxu0 0.0
        %1767 = vmatprep.subr.mxu0 0.0
        %1768 = vmatpush1.msra.mxu0 0.0
        %1769 = vmatprep.subr.mxu0 0.0
        %1770 = vmatpush1.msra.mxu0 0.0
        %1771 = vmatprep.subr.mxu0 0.0
        %1772 = vmatpush1.msra.mxu0 0.0
        %1773 = vmatprep.subr.mxu0 0.0
        %1774 = vmatpush1.msra.mxu0 0.0
        %1775 = vmatprep.subr.mxu0 0.0
        %1776 = vmatpush1.msra.mxu0 0.0
        %1777 = vmatprep.mubr.f32.mxu0 0.0
        %1778 = vmatmul.mubr.f32.gmra.mrb[0].mxu0 %v1704
        %v1779 = vpop.f32.mrb[0].mxu0
        %v1780 = vadd.f32 %v1700, %v1779
        %v1781 = vpop.f32.mrb[0].mxu0
        %1782 = vmatprep.mubr.f32.mxu0 0.0
        %1783 = vmatmul.mubr.f32.gmra.mrb[0].mxu0 %v1707
        %v1784 = vpop.f32.mrb[0].mxu0
        %v1785 = vadd.f32 %v1700, %v1784
        %v1786 = vpop.f32.mrb[0].mxu0
        %1787 = vdwg.mxu0
        %v1788 = vmax.f32 %v1780, 0.0
        %v1789 = vmax.f32 %v1785, 0.0
        %v1790 = vld [vmem:[%s8] sm:$0xff]
        %v1791 = vld [vmem:[%s8 + $0x8] sm:$0xff]
        %v1792 = vld [vmem:[%s8 + $0x10] sm:$0xff]
        %v1793 = vld [vmem:[%s8 + $0x18] sm:$0xff]
        %v1794 = vld [vmem:[%s9] sm:$0x1]
        %v1796 = vlaneseq
        %v1797 = vshrl.u32 %v1796, 7
        %v1798 = vsub.s32 0, %v1797
        %v1799 = vrot.slane %v1794, %v1798
        %vm1801 = vcmask 261120
        %v1803 = vsel %vm1801, %v1788, 0
        %v1806 = vsel %vm1801, %v1789, 0
        %1808 = vmatprep.subr.mxu0 0.0
        %1809 = vmatpush1.msra.mxu0 %v1790
        %1810 = vmatprep.subr.mxu0 0.0
        %1811 = vmatpush1.msra.mxu0 %v1791
        %1812 = vmatprep.subr.mxu0 0.0
        %1813 = vmatpush1.msra.mxu0 %v1792
        %1814 = vmatprep.subr.mxu0 0.0
        %1815 = vmatpush1.msra.mxu0 %v1793
        %1816 = vmatprep.subr.mxu0 0.0
        %1817 = vmatpush1.msra.mxu0 0.0
        %1818 = vmatprep.subr.mxu0 0.0
        %1819 = vmatpush1.msra.mxu0 0.0
        %1820 = vmatprep.subr.mxu0 0.0
        %1821 = vmatpush1.msra.mxu0 0.0
        %1822 = vmatprep.subr.mxu0 0.0
        %1823 = vmatpush1.msra.mxu0 0.0
        %1824 = vmatprep.subr.mxu0 0.0
        %1825 = vmatpush1.msra.mxu0 0.0
        %1826 = vmatprep.subr.mxu0 0.0
        %1827 = vmatpush1.msra.mxu0 0.0
        %1828 = vmatprep.subr.mxu0 0.0
        %1829 = vmatpush1.msra.mxu0 0.0
        %1830 = vmatprep.subr.mxu0 0.0
        %1831 = vmatpush1.msra.mxu0 0.0
        %1832 = vmatprep.subr.mxu0 0.0
        %1833 = vmatpush1.msra.mxu0 0.0
        %1834 = vmatprep.subr.mxu0 0.0
        %1835 = vmatpush1.msra.mxu0 0.0
        %1836 = vmatprep.subr.mxu0 0.0
        %1837 = vmatpush1.msra.mxu0 0.0
        %1838 = vmatprep.subr.mxu0 0.0
        %1839 = vmatpush1.msra.mxu0 0.0
        %1840 = vmatprep.subr.mxu0 0.0
        %1841 = vmatpush1.msra.mxu0 0.0
        %1842 = vmatprep.subr.mxu0 0.0
        %1843 = vmatpush1.msra.mxu0 0.0
        %1844 = vmatprep.subr.mxu0 0.0
        %1845 = vmatpush1.msra.mxu0 0.0
        %1846 = vmatprep.subr.mxu0 0.0
        %1847 = vmatpush1.msra.mxu0 0.0
        %1848 = vmatprep.subr.mxu0 0.0
        %1849 = vmatpush1.msra.mxu0 0.0
        %1850 = vmatprep.subr.mxu0 0.0
        %1851 = vmatpush1.msra.mxu0 0.0
        %1852 = vmatprep.subr.mxu0 0.0
        %1853 = vmatpush1.msra.mxu0 0.0
        %1854 = vmatprep.subr.mxu0 0.0
        %1855 = vmatpush1.msra.mxu0 0.0
        %1856 = vmatprep.subr.mxu0 0.0
        %1857 = vmatpush1.msra.mxu0 0.0
        %1858 = vmatprep.subr.mxu0 0.0
        %1859 = vmatpush1.msra.mxu0 0.0
        %1860 = vmatprep.subr.mxu0 0.0
        %1861 = vmatpush1.msra.mxu0 0.0
        %1862 = vmatprep.subr.mxu0 0.0
        %1863 = vmatpush1.msra.mxu0 0.0
        %1864 = vmatprep.subr.mxu0 0.0
        %1865 = vmatpush1.msra.mxu0 0.0
        %1866 = vmatprep.subr.mxu0 0.0
        %1867 = vmatpush1.msra.mxu0 0.0
        %1868 = vmatprep.subr.mxu0 0.0
        %1869 = vmatpush1.msra.mxu0 0.0
        %1870 = vmatprep.subr.mxu0 0.0
        %1871 = vmatpush1.msra.mxu0 0.0
        %1872 = vmatprep.mubr.f32.mxu0 0.0
        %1873 = vmatmul.mubr.f32.gmra.mrb[0].mxu0 %v1803
        %v1874 = vpop.f32.mrb[0].mxu0
        %v1875 = vadd.f32 %v1799, %v1874
        %v1876 = vpop.f32.mrb[0].mxu0
        %1877 = vmatprep.mubr.f32.mxu0 0.0
        %1878 = vmatmul.mubr.f32.gmra.mrb[0].mxu0 %v1806
        %v1879 = vpop.f32.mrb[0].mxu0
        %v1880 = vadd.f32 %v1799, %v1879
        %v1881 = vpop.f32.mrb[0].mxu0
        %1882 = vdwg.mxu0
        %v1883 = vmax.f32 %v1875, 0.0
        %v1884 = vmax.f32 %v1880, 0.0
        %v1885 = vld [vmem:[%s10] sm:$0xff]
        %v1886 = vld [vmem:[%s10 + $0x8] sm:$0xff]
        %v1887 = vld [vmem:[%s10 + $0x10] sm:$0xff]
        %v1888 = vld [vmem:[%s10 + $0x18] sm:$0xff]
        %v1889 = vld [vmem:[#allocation2] sm:$0x1]
        %v1891 = vlaneseq
        %v1892 = vshrl.u32 %v1891, 7
        %v1893 = vsub.s32 0, %v1892
        %v1894 = vrot.slane %v1889, %v1893
        %v1897 = vsel %vm1801, %v1883, 0
        %v1900 = vsel %vm1801, %v1884, 0
        %1902 = vmatprep.subr.mxu0 0.0
        %1903 = vmatpush1.msra.mxu0 %v1885
        %1904 = vmatprep.subr.mxu0 0.0
        %1905 = vmatpush1.msra.mxu0 %v1886
        %1906 = vmatprep.subr.mxu0 0.0
        %1907 = vmatpush1.msra.mxu0 %v1887
        %1908 = vmatprep.subr.mxu0 0.0
        %1909 = vmatpush1.msra.mxu0 %v1888
        %1910 = vmatprep.subr.mxu0 0.0
        %1911 = vmatpush1.msra.mxu0 0.0
        %1912 = vmatprep.subr.mxu0 0.0
        %1913 = vmatpush1.msra.mxu0 0.0
        %1914 = vmatprep.subr.mxu0 0.0
        %1915 = vmatpush1.msra.mxu0 0.0
        %1916 = vmatprep.subr.mxu0 0.0
        %1917 = vmatpush1.msra.mxu0 0.0
        %1918 = vmatprep.subr.mxu0 0.0
        %1919 = vmatpush1.msra.mxu0 0.0
        %1920 = vmatprep.subr.mxu0 0.0
        %1921 = vmatpush1.msra.mxu0 0.0
        %1922 = vmatprep.subr.mxu0 0.0
        %1923 = vmatpush1.msra.mxu0 0.0
        %1924 = vmatprep.subr.mxu0 0.0
        %1925 = vmatpush1.msra.mxu0 0.0
        %1926 = vmatprep.subr.mxu0 0.0
        %1927 = vmatpush1.msra.mxu0 0.0
        %1928 = vmatprep.subr.mxu0 0.0
        %1929 = vmatpush1.msra.mxu0 0.0
        %1930 = vmatprep.subr.mxu0 0.0
        %1931 = vmatpush1.msra.mxu0 0.0
        %1932 = vmatprep.subr.mxu0 0.0
        %1933 = vmatpush1.msra.mxu0 0.0
        %1934 = vmatprep.subr.mxu0 0.0
        %1935 = vmatpush1.msra.mxu0 0.0
        %1936 = vmatprep.subr.mxu0 0.0
        %1937 = vmatpush1.msra.mxu0 0.0
        %1938 = vmatprep.subr.mxu0 0.0
        %1939 = vmatpush1.msra.mxu0 0.0
        %1940 = vmatprep.subr.mxu0 0.0
        %1941 = vmatpush1.msra.mxu0 0.0
        %1942 = vmatprep.subr.mxu0 0.0
        %1943 = vmatpush1.msra.mxu0 0.0
        %1944 = vmatprep.subr.mxu0 0.0
        %1945 = vmatpush1.msra.mxu0 0.0
        %1946 = vmatprep.subr.mxu0 0.0
        %1947 = vmatpush1.msra.mxu0 0.0
        %1948 = vmatprep.subr.mxu0 0.0
        %1949 = vmatpush1.msra.mxu0 0.0
        %1950 = vmatprep.subr.mxu0 0.0
        %1951 = vmatpush1.msra.mxu0 0.0
        %1952 = vmatprep.subr.mxu0 0.0
        %1953 = vmatpush1.msra.mxu0 0.0
        %1954 = vmatprep.subr.mxu0 0.0
        %1955 = vmatpush1.msra.mxu0 0.0
        %1956 = vmatprep.subr.mxu0 0.0
        %1957 = vmatpush1.msra.mxu0 0.0
        %1958 = vmatprep.subr.mxu0 0.0
        %1959 = vmatpush1.msra.mxu0 0.0
        %1960 = vmatprep.subr.mxu0 0.0
        %1961 = vmatpush1.msra.mxu0 0.0
        %1962 = vmatprep.subr.mxu0 0.0
        %1963 = vmatpush1.msra.mxu0 0.0
        %1964 = vmatprep.subr.mxu0 0.0
        %1965 = vmatpush1.msra.mxu0 0.0
        %1966 = vmatprep.mubr.f32.mxu0 0.0
        %1967 = vmatmul.mubr.f32.gmra.mrb[0].mxu0 %v1897
        %v1968 = vpop.f32.mrb[0].mxu0
        %v1969 = vadd.f32 %v1894, %v1968
        %v1970 = vpop.f32.mrb[0].mxu0
        %1971 = vmatprep.mubr.f32.mxu0 0.0
        %1972 = vmatmul.mubr.f32.gmra.mrb[0].mxu0 %v1900
        %v1973 = vpop.f32.mrb[0].mxu0
        %v1974 = vadd.f32 %v1894, %v1973
        %v1975 = vpop.f32.mrb[0].mxu0
        %1976 = vdwg.mxu0
        %vm1977 = vcmask 7168
        %v1978 = vsel %vm1977, %v1969, 0.0
        %v1979 = vrot.slane %v1978, 4
        %v1980 = vadd.f32 %v1978, %v1979
        %v1981 = vrot.slane %v1980, 2
        %v1982 = vadd.f32 %v1980, %v1981
        %v1983 = vrot.slane %v1982, 1
        %v1984 = vadd.f32 %v1982, %v1983
        %v1985 = vsel %vm1977, %v1974, 0.0
        %v1986 = vrot.slane %v1985, 4
        %v1987 = vadd.f32 %v1985, %v1986
        %v1988 = vrot.slane %v1987, 2
        %v1989 = vadd.f32 %v1987, %v1988
        %v1990 = vrot.slane %v1989, 1
        %v1991 = vadd.f32 %v1989, %v1990
        %vm1992 = vcmask 1040384
        %v1993 = vsel %vm1992, %v1984, %v1991
        %vm1994 = vcmask 1024
        %1995 = vst.msk [vmem:[%s561] sm:$0x3] %vm1994, %v1993
        %p1996 = scmp.lt.s32.totalorder %s25, 1
        %s1997 = scalar_select %p1996, %s25, 1
        %s1998 = smul.addr %s1997, 2
        %s1999 = scalar_lea.vmem %s12, %s1998
        // Predicated region
        $region145: #{tpu_custom_call.1} parent=135 // pred_check
          %p2000 = pneg %p305
        $region146: #{tpu_custom_call.1} parent=135 // pred_check_branch
          %2002 = sbr.rel (%p2000) target = $region148
        $region147: #{tpu_custom_call.1} parent=135 // pred_region
          _
        $region148: #{tpu_custom_call.1} parent=135 // pred_fallthru
          _
      $region136: #{tpu_custom_call.1} parent=5 // pred_fallthru
        _
      %p2003 = scmp.le.s32.totalorder 2, %s20
      // Predicated region
      $region149: #{tpu_custom_call.1} parent=5 // pred_check
        %p2004 = pneg %p2003
      $region150: #{tpu_custom_call.1} parent=5 // pred_check_branch
        %2006 = sbr.rel (%p2004) target = $region152
      $region151: #{tpu_custom_call.1} parent=5 // pred_region
        %s2007 = ssub.s32 %s20, 2
        // Predicated region
        $region153: #{tpu_custom_call.1} parent=151 // pred_check
          %p2008 = pneg %p311
        $region154: #{tpu_custom_call.1} parent=151 // pred_check_branch
          %2010 = sbr.rel (%p2008) target = $region156
        $region155: #{tpu_custom_call.1} parent=151 // pred_region
          %p2011 = scmp.lt.s32.totalorder %s26, 1
          %s2012 = scalar_select %p2011, %s26, 1
          %s2013 = smul.addr %s2012, 2
          %s2014 = scalar_lea.vmem %s12, %s2013
        $region156: #{tpu_custom_call.1} parent=151 // pred_fallthru
          _
      $region152: #{tpu_custom_call.1} parent=5 // pred_fallthru
        _
    $region6: #{tpu_custom_call.1} parent=1 // loop_footer
      %s24 = sadd.s32 1, %s20
    $region7: #{tpu_custom_call.1} parent=1 // loop_footer_branch
      %19 = sbr.rel target = $region3
    $region8: #{tpu_custom_call.1} parent=1 // loop_exit
      _

</llo_original>
